<compile_context>
chip_gen: v5e
topology: v5e:2x2
jax: 0.10.0
libtpu: 0.0.40
codegen_flags: <defaults>
</compile_context>

<pallas_src>
import numpy as np
import jax
import jax.numpy as jnp
from jax.experimental import pallas as pl
from jax.experimental.pallas import tpu as pltpu

# ----------------------------- model hyper-params -----------------------------
B        = 2             # batch
N_VARS   = 4             # M (number of series / variables)
SEQ_LEN  = 32            # L
PATCH    = 8             # args.patch_size
STRIDE   = PATCH // 2    # 4
NUM_PATCHES = (SEQ_LEN - PATCH) // STRIDE + 1   # 7
EMB      = 32            # args.emb_dim
DEPTH    = 2             # args.depth
PRED_LEN = 16            # args.pred_len

K_HALF   = NUM_PATCHES // 2 + 1                 # rfft half-spectrum length = 4
NP_PAD   = 8 * ((NUM_PATCHES + 7) // 8)         # 8  (aligned patch axis)
K_PAD    = 8 * ((K_HALF + 7) // 8)              # 8  (aligned freq axis)

ROWS     = B * N_VARS                           # 8   rows of the (batch*vars) axis
NR       = NP_PAD * ROWS                        # 64  patch-major activation rows
PRED_PAD = 128                                  # pred_len zero-padded to a full lane slab


# ----------------------------- fused Pallas kernel -----------------------------
def _affirm_fused_kernel(xp_ref, w_in_ref, b_in_ref,
                         gamma_ref, beta_ref, filt_ref, mask_ref,
                         fwd_ref, inv_ref, w_out_ref, b_out_ref, o_ref):
    """Whole Affirm trunk for all B*M rows in one invocation.

    Activation layout: (NR, EMB) = (NP_PAD*ROWS, EMB), row index = patch*ROWS + row
    (patch-major), so the per-row DFT over the patch axis is a single matmul with a
    block-diagonal (kron) DFT matrix for ALL rows at once.
    """
    f32 = jnp.float32

    # ---- input_layer: Linear(patch_size -> emb_dim) for all rows/patches ----
    h = (jnp.dot(xp_ref[...], w_in_ref[...], preferred_element_type=f32)
         + b_in_ref[...])                                        # (NR, EMB)

    fwd = fwd_ref[...]                                           # (2*NR, NR)  [Fcos; Fsin]
    inv = inv_ref[...]                                           # (NR, 2*NR)  [Icos | Isin]

    for layer in range(DEPTH):                                   # static unroll (DEPTH=2)
        # hoisted per-layer broadcasts (emitted once, reused)
        gamma = jnp.broadcast_to(gamma_ref[layer:layer + 1, :], (NR, EMB))
        beta  = jnp.broadcast_to(beta_ref[layer:layer + 1, :], (NR, EMB))
        m_low  = jnp.broadcast_to(mask_ref[2 * layer + 0:2 * layer + 1, :], (NR, EMB))
        m_high = jnp.broadcast_to(mask_ref[2 * layer + 1:2 * layer + 2, :], (NR, EMB))

        # ---- norm1: LayerNorm over channel dim (eps=1e-5, affine) ----
        mu = jnp.mean(h, axis=-1, keepdims=True)
        xc = h - mu
        var = jnp.mean(xc * xc, axis=-1, keepdims=True)
        y = xc * jax.lax.rsqrt(var + 1e-5) * gamma + beta

        # ---- rfft along patch axis (norm='ortho'): one stacked block-diag matmul ----
        spec = jnp.dot(fwd, y, preferred_element_type=f32)       # (2*NR, EMB)
        xr = spec[:NR]                                           # Re, (NR, EMB)
        xi = spec[NR:]                                           # Im, (NR, EMB)

        # ---- 3 LearnableFilterLayers: full / low-pass / high-pass spectra ----
        wr = jnp.zeros((NR, EMB), f32)
        wi = jnp.zeros((NR, EMB), f32)
        branches = ((xr, xi),
                    (xr * m_low, xi * m_low),
                    (xr * m_high, xi * m_high))
        for b_idx, (ar, ai) in enumerate(branches):
            base = 12 * layer + 4 * b_idx
            w1r = jnp.broadcast_to(filt_ref[base + 0:base + 1, :], (NR, EMB))
            w1i = jnp.broadcast_to(filt_ref[base + 1:base + 2, :], (NR, EMB))
            w2r = jnp.broadcast_to(filt_ref[base + 2:base + 3, :], (NR, EMB))
            w2i = jnp.broadcast_to(filt_ref[base + 3:base + 4, :], (NR, EMB))
            tr = jnp.maximum(ar * w1r - ai * w1i, 0.0)           # x_fft * w1, complex_relu
            ti = jnp.maximum(ar * w1i + ai * w1r, 0.0)
            wr = wr + tr * w2r - ti * w2i                        # * w2 (complex), accumulate
            wi = wi + tr * w2i + ti * w2r

        # ---- irfft (n=Np, norm='ortho'): one merged matmul, then residual add ----
        yo = jnp.dot(inv, jnp.concatenate([wr, wi], axis=0),
                     preferred_element_type=f32)                 # (NR, EMB)
        h = h + yo

    # ---- out_layer: Linear(emb_dim*num_patches -> pred_len), lane-dense padded output ----
    acc = jnp.broadcast_to(b_out_ref[...], (ROWS, PRED_PAD))
    for p in range(NUM_PATCHES):
        acc = acc + jnp.dot(h[p * ROWS:(p + 1) * ROWS, :],
                            w_out_ref[p * EMB:(p + 1) * EMB, :],
                            preferred_element_type=f32)
    o_ref[...] = acc                                             # (ROWS, 128) unmasked store


def affirm_fused(xp, params):
    return pl.pallas_call(
        _affirm_fused_kernel,
        grid=(1,),
        in_specs=[
            pl.BlockSpec((NR, PATCH), lambda i: (0, 0)),             # patched input
            pl.BlockSpec((PATCH, EMB), lambda i: (0, 0)),            # w_in
            pl.BlockSpec((1, EMB), lambda i: (0, 0)),                # b_in
            pl.BlockSpec((DEPTH, EMB), lambda i: (0, 0)),            # gamma (stacked)
            pl.BlockSpec((DEPTH, EMB), lambda i: (0, 0)),            # beta
            pl.BlockSpec((DEPTH * 12, EMB), lambda i: (0, 0)),       # filter weights
            pl.BlockSpec((DEPTH * 2, EMB), lambda i: (0, 0)),        # low/high masks
            pl.BlockSpec((2 * NR, NR), lambda i: (0, 0)),            # [Fcos; Fsin] block-diag
            pl.BlockSpec((NR, 2 * NR), lambda i: (0, 0)),            # [Icos | Isin] block-diag
            pl.BlockSpec((NP_PAD * EMB, PRED_PAD), lambda i: (0, 0)),# padded w_out
            pl.BlockSpec((1, PRED_PAD), lambda i: (0, 0)),           # padded b_out
        ],
        out_specs=pl.BlockSpec((ROWS, PRED_PAD), lambda i: (0, 0)),
        out_shape=jax.ShapeDtypeStruct((ROWS, PRED_PAD), jnp.float32),
        compiler_params=pltpu.CompilerParams(dimension_semantics=("arbitrary",)),
    )(xp, params['w_in'], params['b_in'],
      params['gamma'], params['beta'], params['filt_w'], params['masks'],
      params['fwd'], params['inv'], params['w_out_pad'], params['b_out_pad'])


# ----------------------------- parameter / constant setup ---------------------
def build_dft_mats_np(n, k, n_pad, k_pad):
    """Ortho-normalized rfft / irfft matrices (zero-padded to aligned shapes), numpy."""
    ns = np.arange(n)
    ks = np.arange(k)
    ang = 2.0 * np.pi * np.outer(ks, ns) / n
    scale = 1.0 / np.sqrt(n)
    fcos = np.cos(ang) * scale                   # Re{rfft}
    fsin = -np.sin(ang) * scale                  # Im{rfft}
    wts = np.full((k,), 2.0)
    wts[0] = 1.0
    if n % 2 == 0:
        wts[-1] = 1.0
    icos = (np.cos(ang).T * wts[None, :]) * scale
    isin = (-np.sin(ang).T * wts[None, :]) * scale

    def pad(m, r, c):
        out = np.zeros((r, c), np.float32)
        out[:m.shape[0], :m.shape[1]] = m
        return out

    return (pad(fcos, k_pad, n_pad), pad(fsin, k_pad, n_pad),
            pad(icos, n_pad, k_pad), pad(isin, n_pad, k_pad))


def build_params(key):
    keys = jax.random.split(key, DEPTH + 2)
    w_in = jax.random.normal(keys[0], (PATCH, EMB), jnp.float32) * 0.02
    b_in = jnp.zeros((1, EMB), jnp.float32)
    w_out = jax.random.normal(keys[1], (NUM_PATCHES * EMB, PRED_LEN), jnp.float32) * 0.02
    b_out = jnp.zeros((PRED_LEN,), jnp.float32)

    # Block-diagonal (kron) DFT matrices: one matmul transforms all ROWS rows at once.
    fcos, fsin, icos, isin = build_dft_mats_np(NUM_PATCHES, K_HALF, NP_PAD, K_PAD)
    eye = np.eye(ROWS, dtype=np.float32)
    fwd = np.concatenate([np.kron(fcos, eye), np.kron(fsin, eye)], axis=0)   # (2*NR, NR)
    inv = np.concatenate([np.kron(icos, eye), np.kron(isin, eye)], axis=1)   # (NR, 2*NR)

    # Output linear padded to a 128-lane slab (extra rows/cols are zero -> exact).
    w_out_pad = jnp.zeros((NP_PAD * EMB, PRED_PAD), jnp.float32)
    w_out_pad = w_out_pad.at[:NUM_PATCHES * EMB, :PRED_LEN].set(w_out)
    b_out_pad = jnp.zeros((1, PRED_PAD), jnp.float32)
    b_out_pad = b_out_pad.at[0, :PRED_LEN].set(b_out)

    # adaptive_freq_pass mask is over the *channel* axis: W=(C-1)*2,
    # rfftfreq(W, 1/W) = [0, 1, ..., C-1]
    freq = np.arange(EMB, dtype=np.float32)
    gammas, betas, filts, masks = [], [], [], []
    for i in range(DEPTH):
        lk = keys[2 + i]
        gammas.append(np.ones((EMB,), np.float32))
        betas.append(np.zeros((EMB,), np.float32))
        # 3 LearnableFilterLayers x (w1_real, w1_imag, w2_real, w2_imag) -> 12 rows
        filts.append(jax.random.normal(lk, (12, EMB), jnp.float32) * 0.02)
        low_cut = EMB // 2 - 0.25      # nn.Parameter(dim//2 - rand*0.5), deterministic
        high_cut = EMB // 4 - 0.25     # nn.Parameter(dim//4 - rand*0.5), deterministic
        masks.append(np.stack([(freq <= low_cut).astype(np.float32),
                               (freq >= high_cut).astype(np.float32)], axis=0))

    return dict(
        w_in=w_in, b_in=b_in,
        gamma=jnp.asarray(np.stack(gammas, axis=0)),          # (DEPTH, EMB)
        beta=jnp.asarray(np.stack(betas, axis=0)),            # (DEPTH, EMB)
        filt_w=jnp.concatenate(filts, axis=0),                # (DEPTH*12, EMB)
        masks=jnp.asarray(np.concatenate(masks, axis=0)),     # (DEPTH*2, EMB)
        fwd=jnp.asarray(fwd), inv=jnp.asarray(inv),
        w_out_pad=w_out_pad, b_out_pad=b_out_pad,
    )


# ----------------------------- full forward pass -------------------------------
def affirm_forward(x, params):
    Bb, L, M = x.shape

    # RevIN-style instance norm (detached stats in torch; just values here)
    means = jnp.mean(x, axis=1, keepdims=True)                       # (B,1,M)
    xc = x - means
    stdev = jnp.sqrt(jnp.mean(xc * xc, axis=1, keepdims=True) + 1e-5)
    xn = xc / stdev

    # b l m -> b m l, then unfold into patches
    xt = jnp.transpose(xn, (0, 2, 1))                                # (B, M, L)
    win = STRIDE * np.arange(NUM_PATCHES)[:, None] + np.arange(PATCH)[None, :]
    patches = xt[:, :, win]                                          # (B, M, Np, P)
    xp = patches.reshape(Bb * M, NUM_PATCHES, PATCH)
    # zero-pad patch axis (exact: padded DFT rows/cols are zero), go patch-major
    xp = jnp.pad(xp, ((0, 0), (0, NP_PAD - NUM_PATCHES), (0, 0)))    # (ROWS, NP_PAD, P)
    xp = jnp.transpose(xp, (1, 0, 2)).reshape(NP_PAD * Bb * M, PATCH)  # (NR, P)

    # One fused kernel: input Linear + DEPTH x (LayerNorm + AFFB residual) + output Linear
    out_pad = affirm_fused(xp, params)                               # (ROWS, 128)
    out = out_pad[:, :PRED_LEN]                                      # (B*M, pred_len)

    # (b m) l -> b l m, then de-normalize
    out = out.reshape(Bb, M, PRED_LEN).transpose(0, 2, 1)            # (B, pred_len, M)
    out = out * stdev + means
    return out


# ----------------------------- main --------------------------------------------
if __name__ == "__main__":
    key = jax.random.PRNGKey(0)
    kx, kp = jax.random.split(key)
    x = jax.random.normal(kx, (B, SEQ_LEN, N_VARS), jnp.float32)
    params = build_params(kp)

    out = jax.jit(affirm_forward)(x, params)
    out = jax.block_until_ready(out)
    assert out.shape == (B, PRED_LEN, N_VARS)
    assert bool(jnp.all(jnp.isfinite(out)))
    print("KERNEL_OK")
</pallas_src>

<mosaic_0001>
module attributes {stable_mosaic.version = 11 : i64} {
  func.func @_affirm_fused_kernel(%arg0: i32, %arg1: memref<64x8xf32, #tpu.memory_space<vmem>>, %arg2: memref<8x32xf32, #tpu.memory_space<vmem>>, %arg3: memref<1x32xf32, #tpu.memory_space<vmem>>, %arg4: memref<2x32xf32, #tpu.memory_space<vmem>>, %arg5: memref<2x32xf32, #tpu.memory_space<vmem>>, %arg6: memref<24x32xf32, #tpu.memory_space<vmem>>, %arg7: memref<4x32xf32, #tpu.memory_space<vmem>>, %arg8: memref<128x64xf32, #tpu.memory_space<vmem>>, %arg9: memref<64x128xf32, #tpu.memory_space<vmem>>, %arg10: memref<256x128xf32, #tpu.memory_space<vmem>>, %arg11: memref<1x128xf32, #tpu.memory_space<vmem>>, %arg12: memref<8x128xf32, #tpu.memory_space<vmem>>) attributes {dimension_semantics = [#tpu.dimension_semantics<arbitrary>], iteration_bounds = array<i64: 1>, scalar_prefetch = 0 : i64, scratch_operands = 0 : i64, tpu.core_type = #tpu.core_type<tc>, window_params = [{pipeline_mode = #tpu.pipeline_mode<synchronous>, transform_indices = @transform_0, window_bounds = array<i64: 64, 8>}, {pipeline_mode = #tpu.pipeline_mode<synchronous>, transform_indices = @transform_1, window_bounds = array<i64: 8, 32>}, {pipeline_mode = #tpu.pipeline_mode<synchronous>, transform_indices = @transform_2, window_bounds = array<i64: 1, 32>}, {pipeline_mode = #tpu.pipeline_mode<synchronous>, transform_indices = @transform_3, window_bounds = array<i64: 2, 32>}, {pipeline_mode = #tpu.pipeline_mode<synchronous>, transform_indices = @transform_4, window_bounds = array<i64: 2, 32>}, {pipeline_mode = #tpu.pipeline_mode<synchronous>, transform_indices = @transform_5, window_bounds = array<i64: 24, 32>}, {pipeline_mode = #tpu.pipeline_mode<synchronous>, transform_indices = @transform_6, window_bounds = array<i64: 4, 32>}, {pipeline_mode = #tpu.pipeline_mode<synchronous>, transform_indices = @transform_7, window_bounds = array<i64: 128, 64>}, {pipeline_mode = #tpu.pipeline_mode<synchronous>, transform_indices = @transform_8, window_bounds = array<i64: 64, 128>}, {pipeline_mode = #tpu.pipeline_mode<synchronous>, transform_indices = @transform_9, window_bounds = array<i64: 256, 128>}, {pipeline_mode = #tpu.pipeline_mode<synchronous>, transform_indices = @transform_10, window_bounds = array<i64: 1, 128>}, {pipeline_mode = #tpu.pipeline_mode<synchronous>, transform_indices = @transform_11, window_bounds = array<i64: 8, 128>}]} {
    %c0 = arith.constant 0 : index
    %c0_0 = arith.constant 0 : index
    %0 = vector.load %arg1[%c0, %c0_0] : memref<64x8xf32, #tpu.memory_space<vmem>>, vector<64x8xf32>
    %c0_1 = arith.constant 0 : index
    %c0_2 = arith.constant 0 : index
    %1 = vector.load %arg2[%c0_1, %c0_2] : memref<8x32xf32, #tpu.memory_space<vmem>>, vector<8x32xf32>
    %cst = arith.constant dense<0.000000e+00> : vector<64x32xf32>
    %2 = tpu.matmul %0, %1, %cst {dimension_numbers = #tpu.dot_dimension_numbers<[1], [0], [0], [1], [0, 0, 1, 1], [], []>} : vector<64x8xf32>, vector<8x32xf32>, vector<64x32xf32> -> vector<64x32xf32>
    %c0_3 = arith.constant 0 : index
    %c0_4 = arith.constant 0 : index
    %3 = vector.load %arg3[%c0_3, %c0_4] : memref<1x32xf32, #tpu.memory_space<vmem>>, vector<1x32xf32>
    %4 = vector.broadcast %3 : vector<1x32xf32> to vector<64x32xf32>
    %5 = arith.addf %2, %4 : vector<64x32xf32>
    %c0_5 = arith.constant 0 : index
    %c0_6 = arith.constant 0 : index
    %6 = vector.load %arg8[%c0_5, %c0_6] : memref<128x64xf32, #tpu.memory_space<vmem>>, vector<128x64xf32>
    %c0_7 = arith.constant 0 : index
    %c0_8 = arith.constant 0 : index
    %7 = vector.load %arg9[%c0_7, %c0_8] : memref<64x128xf32, #tpu.memory_space<vmem>>, vector<64x128xf32>
    %c0_9 = arith.constant 0 : index
    %c0_10 = arith.constant 0 : index
    %8 = vector.load %arg4[%c0_9, %c0_10] : memref<2x32xf32, #tpu.memory_space<vmem>>, vector<1x32xf32>
    %9 = vector.shape_cast %8 : vector<1x32xf32> to vector<1x32xf32>
    %10 = vector.broadcast %9 : vector<1x32xf32> to vector<64x32xf32>
    %c0_11 = arith.constant 0 : index
    %c0_12 = arith.constant 0 : index
    %11 = vector.load %arg5[%c0_11, %c0_12] : memref<2x32xf32, #tpu.memory_space<vmem>>, vector<1x32xf32>
    %12 = vector.shape_cast %11 : vector<1x32xf32> to vector<1x32xf32>
    %13 = vector.broadcast %12 : vector<1x32xf32> to vector<64x32xf32>
    %c0_13 = arith.constant 0 : index
    %c0_14 = arith.constant 0 : index
    %14 = vector.load %arg7[%c0_13, %c0_14] : memref<4x32xf32, #tpu.memory_space<vmem>>, vector<1x32xf32>
    %15 = vector.shape_cast %14 : vector<1x32xf32> to vector<1x32xf32>
    %16 = vector.broadcast %15 : vector<1x32xf32> to vector<64x32xf32>
    %c1 = arith.constant 1 : index
    %c0_15 = arith.constant 0 : index
    %17 = vector.load %arg7[%c1, %c0_15] : memref<4x32xf32, #tpu.memory_space<vmem>>, vector<1x32xf32>
    %18 = vector.shape_cast %17 : vector<1x32xf32> to vector<1x32xf32>
    %19 = vector.broadcast %18 : vector<1x32xf32> to vector<64x32xf32>
    %cst_16 = arith.constant dense<0.000000e+00> : vector<64xf32>
    %20 = vector.multi_reduction <add>, %5, %cst_16 [1] : vector<64x32xf32> to vector<64xf32>
    %21 = vector.shape_cast %20 : vector<64xf32> to vector<64x1xf32>
    %cst_17 = arith.constant 3.200000e+01 : f32
    %22 = vector.broadcast %cst_17 : f32 to vector<64x1xf32>
    %23 = arith.divf %21, %22 : vector<64x1xf32>
    %24 = vector.broadcast %23 : vector<64x1xf32> to vector<64x32xf32>
    %25 = arith.subf %5, %24 : vector<64x32xf32>
    %26 = arith.mulf %25, %25 : vector<64x32xf32>
    %cst_18 = arith.constant dense<0.000000e+00> : vector<64xf32>
    %27 = vector.multi_reduction <add>, %26, %cst_18 [1] : vector<64x32xf32> to vector<64xf32>
    %28 = vector.shape_cast %27 : vector<64xf32> to vector<64x1xf32>
    %cst_19 = arith.constant 3.200000e+01 : f32
    %29 = vector.broadcast %cst_19 : f32 to vector<64x1xf32>
    %30 = arith.divf %28, %29 : vector<64x1xf32>
    %cst_20 = arith.constant 9.99999974E-6 : f32
    %31 = vector.broadcast %cst_20 : f32 to vector<64x1xf32>
    %32 = arith.addf %30, %31 : vector<64x1xf32>
    %33 = math.rsqrt %32 : vector<64x1xf32>
    %34 = vector.broadcast %33 : vector<64x1xf32> to vector<64x32xf32>
    %35 = arith.mulf %25, %34 : vector<64x32xf32>
    %36 = arith.mulf %35, %10 : vector<64x32xf32>
    %37 = arith.addf %36, %13 : vector<64x32xf32>
    %cst_21 = arith.constant dense<0.000000e+00> : vector<128x32xf32>
    %38 = tpu.matmul %6, %37, %cst_21 {dimension_numbers = #tpu.dot_dimension_numbers<[1], [0], [0], [1], [0, 0, 1, 1], [], []>} : vector<128x64xf32>, vector<64x32xf32>, vector<128x32xf32> -> vector<128x32xf32>
    %39 = vector.extract_strided_slice %38 {offsets = [0, 0], sizes = [64, 32], strides = [1, 1]} : vector<128x32xf32> to vector<64x32xf32>
    %40 = vector.extract_strided_slice %38 {offsets = [64, 0], sizes = [64, 32], strides = [1, 1]} : vector<128x32xf32> to vector<64x32xf32>
    %cst_22 = arith.constant 0.000000e+00 : f32
    %41 = vector.broadcast %cst_22 : f32 to vector<64x32xf32>
    %cst_23 = arith.constant 0.000000e+00 : f32
    %42 = vector.broadcast %cst_23 : f32 to vector<64x32xf32>
    %43 = arith.mulf %39, %16 : vector<64x32xf32>
    %44 = arith.mulf %40, %16 : vector<64x32xf32>
    %45 = arith.mulf %39, %19 : vector<64x32xf32>
    %46 = arith.mulf %40, %19 : vector<64x32xf32>
    %c0_24 = arith.constant 0 : index
    %c0_25 = arith.constant 0 : index
    %47 = vector.load %arg6[%c0_24, %c0_25] : memref<24x32xf32, #tpu.memory_space<vmem>>, vector<1x32xf32>
    %48 = vector.shape_cast %47 : vector<1x32xf32> to vector<1x32xf32>
    %49 = vector.broadcast %48 : vector<1x32xf32> to vector<64x32xf32>
    %c1_26 = arith.constant 1 : index
    %c0_27 = arith.constant 0 : index
    %50 = vector.load %arg6[%c1_26, %c0_27] : memref<24x32xf32, #tpu.memory_space<vmem>>, vector<1x32xf32>
    %51 = vector.shape_cast %50 : vector<1x32xf32> to vector<1x32xf32>
    %52 = vector.broadcast %51 : vector<1x32xf32> to vector<64x32xf32>
    %c2 = arith.constant 2 : index
    %c0_28 = arith.constant 0 : index
    %53 = vector.load %arg6[%c2, %c0_28] : memref<24x32xf32, #tpu.memory_space<vmem>>, vector<1x32xf32>
    %54 = vector.shape_cast %53 : vector<1x32xf32> to vector<1x32xf32>
    %55 = vector.broadcast %54 : vector<1x32xf32> to vector<64x32xf32>
    %c3 = arith.constant 3 : index
    %c0_29 = arith.constant 0 : index
    %56 = vector.load %arg6[%c3, %c0_29] : memref<24x32xf32, #tpu.memory_space<vmem>>, vector<1x32xf32>
    %57 = vector.shape_cast %56 : vector<1x32xf32> to vector<1x32xf32>
    %58 = vector.broadcast %57 : vector<1x32xf32> to vector<64x32xf32>
    %59 = arith.mulf %39, %49 : vector<64x32xf32>
    %60 = arith.mulf %40, %52 : vector<64x32xf32>
    %61 = arith.subf %59, %60 : vector<64x32xf32>
    %cst_30 = arith.constant 0.000000e+00 : f32
    %62 = vector.broadcast %cst_30 : f32 to vector<64x32xf32>
    %63 = arith.maximumf %61, %62 : vector<64x32xf32>
    %64 = arith.mulf %39, %52 : vector<64x32xf32>
    %65 = arith.mulf %40, %49 : vector<64x32xf32>
    %66 = arith.addf %64, %65 : vector<64x32xf32>
    %cst_31 = arith.constant 0.000000e+00 : f32
    %67 = vector.broadcast %cst_31 : f32 to vector<64x32xf32>
    %68 = arith.maximumf %66, %67 : vector<64x32xf32>
    %69 = arith.mulf %63, %55 : vector<64x32xf32>
    %70 = arith.addf %41, %69 : vector<64x32xf32>
    %71 = arith.mulf %68, %58 : vector<64x32xf32>
    %72 = arith.subf %70, %71 : vector<64x32xf32>
    %73 = arith.mulf %63, %58 : vector<64x32xf32>
    %74 = arith.addf %42, %73 : vector<64x32xf32>
    %75 = arith.mulf %68, %55 : vector<64x32xf32>
    %76 = arith.addf %74, %75 : vector<64x32xf32>
    %c4 = arith.constant 4 : index
    %c0_32 = arith.constant 0 : index
    %77 = vector.load %arg6[%c4, %c0_32] : memref<24x32xf32, #tpu.memory_space<vmem>>, vector<1x32xf32>
    %78 = vector.shape_cast %77 : vector<1x32xf32> to vector<1x32xf32>
    %79 = vector.broadcast %78 : vector<1x32xf32> to vector<64x32xf32>
    %c5 = arith.constant 5 : index
    %c0_33 = arith.constant 0 : index
    %80 = vector.load %arg6[%c5, %c0_33] : memref<24x32xf32, #tpu.memory_space<vmem>>, vector<1x32xf32>
    %81 = vector.shape_cast %80 : vector<1x32xf32> to vector<1x32xf32>
    %82 = vector.broadcast %81 : vector<1x32xf32> to vector<64x32xf32>
    %c6 = arith.constant 6 : index
    %c0_34 = arith.constant 0 : index
    %83 = vector.load %arg6[%c6, %c0_34] : memref<24x32xf32, #tpu.memory_space<vmem>>, vector<1x32xf32>
    %84 = vector.shape_cast %83 : vector<1x32xf32> to vector<1x32xf32>
    %85 = vector.broadcast %84 : vector<1x32xf32> to vector<64x32xf32>
    %c7 = arith.constant 7 : index
    %c0_35 = arith.constant 0 : index
    %86 = vector.load %arg6[%c7, %c0_35] : memref<24x32xf32, #tpu.memory_space<vmem>>, vector<1x32xf32>
    %87 = vector.shape_cast %86 : vector<1x32xf32> to vector<1x32xf32>
    %88 = vector.broadcast %87 : vector<1x32xf32> to vector<64x32xf32>
    %89 = arith.mulf %43, %79 : vector<64x32xf32>
    %90 = arith.mulf %44, %82 : vector<64x32xf32>
    %91 = arith.subf %89, %90 : vector<64x32xf32>
    %cst_36 = arith.constant 0.000000e+00 : f32
    %92 = vector.broadcast %cst_36 : f32 to vector<64x32xf32>
    %93 = arith.maximumf %91, %92 : vector<64x32xf32>
    %94 = arith.mulf %43, %82 : vector<64x32xf32>
    %95 = arith.mulf %44, %79 : vector<64x32xf32>
    %96 = arith.addf %94, %95 : vector<64x32xf32>
    %cst_37 = arith.constant 0.000000e+00 : f32
    %97 = vector.broadcast %cst_37 : f32 to vector<64x32xf32>
    %98 = arith.maximumf %96, %97 : vector<64x32xf32>
    %99 = arith.mulf %93, %85 : vector<64x32xf32>
    %100 = arith.addf %72, %99 : vector<64x32xf32>
    %101 = arith.mulf %98, %88 : vector<64x32xf32>
    %102 = arith.subf %100, %101 : vector<64x32xf32>
    %103 = arith.mulf %93, %88 : vector<64x32xf32>
    %104 = arith.addf %76, %103 : vector<64x32xf32>
    %105 = arith.mulf %98, %85 : vector<64x32xf32>
    %106 = arith.addf %104, %105 : vector<64x32xf32>
    %c8 = arith.constant 8 : index
    %c0_38 = arith.constant 0 : index
    %107 = vector.load %arg6[%c8, %c0_38] : memref<24x32xf32, #tpu.memory_space<vmem>>, vector<1x32xf32>
    %108 = vector.shape_cast %107 : vector<1x32xf32> to vector<1x32xf32>
    %109 = vector.broadcast %108 : vector<1x32xf32> to vector<64x32xf32>
    %c9 = arith.constant 9 : index
    %c0_39 = arith.constant 0 : index
    %110 = vector.load %arg6[%c9, %c0_39] : memref<24x32xf32, #tpu.memory_space<vmem>>, vector<1x32xf32>
    %111 = vector.shape_cast %110 : vector<1x32xf32> to vector<1x32xf32>
    %112 = vector.broadcast %111 : vector<1x32xf32> to vector<64x32xf32>
    %c10 = arith.constant 10 : index
    %c0_40 = arith.constant 0 : index
    %113 = vector.load %arg6[%c10, %c0_40] : memref<24x32xf32, #tpu.memory_space<vmem>>, vector<1x32xf32>
    %114 = vector.shape_cast %113 : vector<1x32xf32> to vector<1x32xf32>
    %115 = vector.broadcast %114 : vector<1x32xf32> to vector<64x32xf32>
    %c11 = arith.constant 11 : index
    %c0_41 = arith.constant 0 : index
    %116 = vector.load %arg6[%c11, %c0_41] : memref<24x32xf32, #tpu.memory_space<vmem>>, vector<1x32xf32>
    %117 = vector.shape_cast %116 : vector<1x32xf32> to vector<1x32xf32>
    %118 = vector.broadcast %117 : vector<1x32xf32> to vector<64x32xf32>
    %119 = arith.mulf %45, %109 : vector<64x32xf32>
    %120 = arith.mulf %46, %112 : vector<64x32xf32>
    %121 = arith.subf %119, %120 : vector<64x32xf32>
    %cst_42 = arith.constant 0.000000e+00 : f32
    %122 = vector.broadcast %cst_42 : f32 to vector<64x32xf32>
    %123 = arith.maximumf %121, %122 : vector<64x32xf32>
    %124 = arith.mulf %45, %112 : vector<64x32xf32>
    %125 = arith.mulf %46, %109 : vector<64x32xf32>
    %126 = arith.addf %124, %125 : vector<64x32xf32>
    %cst_43 = arith.constant 0.000000e+00 : f32
    %127 = vector.broadcast %cst_43 : f32 to vector<64x32xf32>
    %128 = arith.maximumf %126, %127 : vector<64x32xf32>
    %129 = arith.mulf %123, %115 : vector<64x32xf32>
    %130 = arith.addf %102, %129 : vector<64x32xf32>
    %131 = arith.mulf %128, %118 : vector<64x32xf32>
    %132 = arith.subf %130, %131 : vector<64x32xf32>
    %133 = arith.mulf %123, %118 : vector<64x32xf32>
    %134 = arith.addf %106, %133 : vector<64x32xf32>
    %135 = arith.mulf %128, %115 : vector<64x32xf32>
    %136 = arith.addf %134, %135 : vector<64x32xf32>
    %137 = tpu.concatenate %132, %136 in 0 : vector<64x32xf32>, vector<64x32xf32> -> vector<128x32xf32>
    %cst_44 = arith.constant dense<0.000000e+00> : vector<64x32xf32>
    %138 = tpu.matmul %7, %137, %cst_44 {dimension_numbers = #tpu.dot_dimension_numbers<[1], [0], [0], [1], [0, 0, 1, 1], [], []>} : vector<64x128xf32>, vector<128x32xf32>, vector<64x32xf32> -> vector<64x32xf32>
    %139 = arith.addf %5, %138 : vector<64x32xf32>
    %c1_45 = arith.constant 1 : index
    %c0_46 = arith.constant 0 : index
    %140 = vector.load %arg4[%c1_45, %c0_46] : memref<2x32xf32, #tpu.memory_space<vmem>>, vector<1x32xf32>
    %141 = vector.shape_cast %140 : vector<1x32xf32> to vector<1x32xf32>
    %142 = vector.broadcast %141 : vector<1x32xf32> to vector<64x32xf32>
    %c1_47 = arith.constant 1 : index
    %c0_48 = arith.constant 0 : index
    %143 = vector.load %arg5[%c1_47, %c0_48] : memref<2x32xf32, #tpu.memory_space<vmem>>, vector<1x32xf32>
    %144 = vector.shape_cast %143 : vector<1x32xf32> to vector<1x32xf32>
    %145 = vector.broadcast %144 : vector<1x32xf32> to vector<64x32xf32>
    %c2_49 = arith.constant 2 : index
    %c0_50 = arith.constant 0 : index
    %146 = vector.load %arg7[%c2_49, %c0_50] : memref<4x32xf32, #tpu.memory_space<vmem>>, vector<1x32xf32>
    %147 = vector.shape_cast %146 : vector<1x32xf32> to vector<1x32xf32>
    %148 = vector.broadcast %147 : vector<1x32xf32> to vector<64x32xf32>
    %c3_51 = arith.constant 3 : index
    %c0_52 = arith.constant 0 : index
    %149 = vector.load %arg7[%c3_51, %c0_52] : memref<4x32xf32, #tpu.memory_space<vmem>>, vector<1x32xf32>
    %150 = vector.shape_cast %149 : vector<1x32xf32> to vector<1x32xf32>
    %151 = vector.broadcast %150 : vector<1x32xf32> to vector<64x32xf32>
    %cst_53 = arith.constant dense<0.000000e+00> : vector<64xf32>
    %152 = vector.multi_reduction <add>, %139, %cst_53 [1] : vector<64x32xf32> to vector<64xf32>
    %153 = vector.shape_cast %152 : vector<64xf32> to vector<64x1xf32>
    %cst_54 = arith.constant 3.200000e+01 : f32
    %154 = vector.broadcast %cst_54 : f32 to vector<64x1xf32>
    %155 = arith.divf %153, %154 : vector<64x1xf32>
    %156 = vector.broadcast %155 : vector<64x1xf32> to vector<64x32xf32>
    %157 = arith.subf %139, %156 : vector<64x32xf32>
    %158 = arith.mulf %157, %157 : vector<64x32xf32>
    %cst_55 = arith.constant dense<0.000000e+00> : vector<64xf32>
    %159 = vector.multi_reduction <add>, %158, %cst_55 [1] : vector<64x32xf32> to vector<64xf32>
    %160 = vector.shape_cast %159 : vector<64xf32> to vector<64x1xf32>
    %cst_56 = arith.constant 3.200000e+01 : f32
    %161 = vector.broadcast %cst_56 : f32 to vector<64x1xf32>
    %162 = arith.divf %160, %161 : vector<64x1xf32>
    %cst_57 = arith.constant 9.99999974E-6 : f32
    %163 = vector.broadcast %cst_57 : f32 to vector<64x1xf32>
    %164 = arith.addf %162, %163 : vector<64x1xf32>
    %165 = math.rsqrt %164 : vector<64x1xf32>
    %166 = vector.broadcast %165 : vector<64x1xf32> to vector<64x32xf32>
    %167 = arith.mulf %157, %166 : vector<64x32xf32>
    %168 = arith.mulf %167, %142 : vector<64x32xf32>
    %169 = arith.addf %168, %145 : vector<64x32xf32>
    %cst_58 = arith.constant dense<0.000000e+00> : vector<128x32xf32>
    %170 = tpu.matmul %6, %169, %cst_58 {dimension_numbers = #tpu.dot_dimension_numbers<[1], [0], [0], [1], [0, 0, 1, 1], [], []>} : vector<128x64xf32>, vector<64x32xf32>, vector<128x32xf32> -> vector<128x32xf32>
    %171 = vector.extract_strided_slice %170 {offsets = [0, 0], sizes = [64, 32], strides = [1, 1]} : vector<128x32xf32> to vector<64x32xf32>
    %172 = vector.extract_strided_slice %170 {offsets = [64, 0], sizes = [64, 32], strides = [1, 1]} : vector<128x32xf32> to vector<64x32xf32>
    %cst_59 = arith.constant 0.000000e+00 : f32
    %173 = vector.broadcast %cst_59 : f32 to vector<64x32xf32>
    %cst_60 = arith.constant 0.000000e+00 : f32
    %174 = vector.broadcast %cst_60 : f32 to vector<64x32xf32>
    %175 = arith.mulf %171, %148 : vector<64x32xf32>
    %176 = arith.mulf %172, %148 : vector<64x32xf32>
    %177 = arith.mulf %171, %151 : vector<64x32xf32>
    %178 = arith.mulf %172, %151 : vector<64x32xf32>
    %c12 = arith.constant 12 : index
    %c0_61 = arith.constant 0 : index
    %179 = vector.load %arg6[%c12, %c0_61] : memref<24x32xf32, #tpu.memory_space<vmem>>, vector<1x32xf32>
    %180 = vector.shape_cast %179 : vector<1x32xf32> to vector<1x32xf32>
    %181 = vector.broadcast %180 : vector<1x32xf32> to vector<64x32xf32>
    %c13 = arith.constant 13 : index
    %c0_62 = arith.constant 0 : index
    %182 = vector.load %arg6[%c13, %c0_62] : memref<24x32xf32, #tpu.memory_space<vmem>>, vector<1x32xf32>
    %183 = vector.shape_cast %182 : vector<1x32xf32> to vector<1x32xf32>
    %184 = vector.broadcast %183 : vector<1x32xf32> to vector<64x32xf32>
    %c14 = arith.constant 14 : index
    %c0_63 = arith.constant 0 : index
    %185 = vector.load %arg6[%c14, %c0_63] : memref<24x32xf32, #tpu.memory_space<vmem>>, vector<1x32xf32>
    %186 = vector.shape_cast %185 : vector<1x32xf32> to vector<1x32xf32>
    %187 = vector.broadcast %186 : vector<1x32xf32> to vector<64x32xf32>
    %c15 = arith.constant 15 : index
    %c0_64 = arith.constant 0 : index
    %188 = vector.load %arg6[%c15, %c0_64] : memref<24x32xf32, #tpu.memory_space<vmem>>, vector<1x32xf32>
    %189 = vector.shape_cast %188 : vector<1x32xf32> to vector<1x32xf32>
    %190 = vector.broadcast %189 : vector<1x32xf32> to vector<64x32xf32>
    %191 = arith.mulf %171, %181 : vector<64x32xf32>
    %192 = arith.mulf %172, %184 : vector<64x32xf32>
    %193 = arith.subf %191, %192 : vector<64x32xf32>
    %cst_65 = arith.constant 0.000000e+00 : f32
    %194 = vector.broadcast %cst_65 : f32 to vector<64x32xf32>
    %195 = arith.maximumf %193, %194 : vector<64x32xf32>
    %196 = arith.mulf %171, %184 : vector<64x32xf32>
    %197 = arith.mulf %172, %181 : vector<64x32xf32>
    %198 = arith.addf %196, %197 : vector<64x32xf32>
    %cst_66 = arith.constant 0.000000e+00 : f32
    %199 = vector.broadcast %cst_66 : f32 to vector<64x32xf32>
    %200 = arith.maximumf %198, %199 : vector<64x32xf32>
    %201 = arith.mulf %195, %187 : vector<64x32xf32>
    %202 = arith.addf %173, %201 : vector<64x32xf32>
    %203 = arith.mulf %200, %190 : vector<64x32xf32>
    %204 = arith.subf %202, %203 : vector<64x32xf32>
    %205 = arith.mulf %195, %190 : vector<64x32xf32>
    %206 = arith.addf %174, %205 : vector<64x32xf32>
    %207 = arith.mulf %200, %187 : vector<64x32xf32>
    %208 = arith.addf %206, %207 : vector<64x32xf32>
    %c16 = arith.constant 16 : index
    %c0_67 = arith.constant 0 : index
    %209 = vector.load %arg6[%c16, %c0_67] : memref<24x32xf32, #tpu.memory_space<vmem>>, vector<1x32xf32>
    %210 = vector.shape_cast %209 : vector<1x32xf32> to vector<1x32xf32>
    %211 = vector.broadcast %210 : vector<1x32xf32> to vector<64x32xf32>
    %c17 = arith.constant 17 : index
    %c0_68 = arith.constant 0 : index
    %212 = vector.load %arg6[%c17, %c0_68] : memref<24x32xf32, #tpu.memory_space<vmem>>, vector<1x32xf32>
    %213 = vector.shape_cast %212 : vector<1x32xf32> to vector<1x32xf32>
    %214 = vector.broadcast %213 : vector<1x32xf32> to vector<64x32xf32>
    %c18 = arith.constant 18 : index
    %c0_69 = arith.constant 0 : index
    %215 = vector.load %arg6[%c18, %c0_69] : memref<24x32xf32, #tpu.memory_space<vmem>>, vector<1x32xf32>
    %216 = vector.shape_cast %215 : vector<1x32xf32> to vector<1x32xf32>
    %217 = vector.broadcast %216 : vector<1x32xf32> to vector<64x32xf32>
    %c19 = arith.constant 19 : index
    %c0_70 = arith.constant 0 : index
    %218 = vector.load %arg6[%c19, %c0_70] : memref<24x32xf32, #tpu.memory_space<vmem>>, vector<1x32xf32>
    %219 = vector.shape_cast %218 : vector<1x32xf32> to vector<1x32xf32>
    %220 = vector.broadcast %219 : vector<1x32xf32> to vector<64x32xf32>
    %221 = arith.mulf %175, %211 : vector<64x32xf32>
    %222 = arith.mulf %176, %214 : vector<64x32xf32>
    %223 = arith.subf %221, %222 : vector<64x32xf32>
    %cst_71 = arith.constant 0.000000e+00 : f32
    %224 = vector.broadcast %cst_71 : f32 to vector<64x32xf32>
    %225 = arith.maximumf %223, %224 : vector<64x32xf32>
    %226 = arith.mulf %175, %214 : vector<64x32xf32>
    %227 = arith.mulf %176, %211 : vector<64x32xf32>
    %228 = arith.addf %226, %227 : vector<64x32xf32>
    %cst_72 = arith.constant 0.000000e+00 : f32
    %229 = vector.broadcast %cst_72 : f32 to vector<64x32xf32>
    %230 = arith.maximumf %228, %229 : vector<64x32xf32>
    %231 = arith.mulf %225, %217 : vector<64x32xf32>
    %232 = arith.addf %204, %231 : vector<64x32xf32>
    %233 = arith.mulf %230, %220 : vector<64x32xf32>
    %234 = arith.subf %232, %233 : vector<64x32xf32>
    %235 = arith.mulf %225, %220 : vector<64x32xf32>
    %236 = arith.addf %208, %235 : vector<64x32xf32>
    %237 = arith.mulf %230, %217 : vector<64x32xf32>
    %238 = arith.addf %236, %237 : vector<64x32xf32>
    %c20 = arith.constant 20 : index
    %c0_73 = arith.constant 0 : index
    %239 = vector.load %arg6[%c20, %c0_73] : memref<24x32xf32, #tpu.memory_space<vmem>>, vector<1x32xf32>
    %240 = vector.shape_cast %239 : vector<1x32xf32> to vector<1x32xf32>
    %241 = vector.broadcast %240 : vector<1x32xf32> to vector<64x32xf32>
    %c21 = arith.constant 21 : index
    %c0_74 = arith.constant 0 : index
    %242 = vector.load %arg6[%c21, %c0_74] : memref<24x32xf32, #tpu.memory_space<vmem>>, vector<1x32xf32>
    %243 = vector.shape_cast %242 : vector<1x32xf32> to vector<1x32xf32>
    %244 = vector.broadcast %243 : vector<1x32xf32> to vector<64x32xf32>
    %c22 = arith.constant 22 : index
    %c0_75 = arith.constant 0 : index
    %245 = vector.load %arg6[%c22, %c0_75] : memref<24x32xf32, #tpu.memory_space<vmem>>, vector<1x32xf32>
    %246 = vector.shape_cast %245 : vector<1x32xf32> to vector<1x32xf32>
    %247 = vector.broadcast %246 : vector<1x32xf32> to vector<64x32xf32>
    %c23 = arith.constant 23 : index
    %c0_76 = arith.constant 0 : index
    %248 = vector.load %arg6[%c23, %c0_76] : memref<24x32xf32, #tpu.memory_space<vmem>>, vector<1x32xf32>
    %249 = vector.shape_cast %248 : vector<1x32xf32> to vector<1x32xf32>
    %250 = vector.broadcast %249 : vector<1x32xf32> to vector<64x32xf32>
    %251 = arith.mulf %177, %241 : vector<64x32xf32>
    %252 = arith.mulf %178, %244 : vector<64x32xf32>
    %253 = arith.subf %251, %252 : vector<64x32xf32>
    %cst_77 = arith.constant 0.000000e+00 : f32
    %254 = vector.broadcast %cst_77 : f32 to vector<64x32xf32>
    %255 = arith.maximumf %253, %254 : vector<64x32xf32>
    %256 = arith.mulf %177, %244 : vector<64x32xf32>
    %257 = arith.mulf %178, %241 : vector<64x32xf32>
    %258 = arith.addf %256, %257 : vector<64x32xf32>
    %cst_78 = arith.constant 0.000000e+00 : f32
    %259 = vector.broadcast %cst_78 : f32 to vector<64x32xf32>
    %260 = arith.maximumf %258, %259 : vector<64x32xf32>
    %261 = arith.mulf %255, %247 : vector<64x32xf32>
    %262 = arith.addf %234, %261 : vector<64x32xf32>
    %263 = arith.mulf %260, %250 : vector<64x32xf32>
    %264 = arith.subf %262, %263 : vector<64x32xf32>
    %265 = arith.mulf %255, %250 : vector<64x32xf32>
    %266 = arith.addf %238, %265 : vector<64x32xf32>
    %267 = arith.mulf %260, %247 : vector<64x32xf32>
    %268 = arith.addf %266, %267 : vector<64x32xf32>
    %269 = tpu.concatenate %264, %268 in 0 : vector<64x32xf32>, vector<64x32xf32> -> vector<128x32xf32>
    %cst_79 = arith.constant dense<0.000000e+00> : vector<64x32xf32>
    %270 = tpu.matmul %7, %269, %cst_79 {dimension_numbers = #tpu.dot_dimension_numbers<[1], [0], [0], [1], [0, 0, 1, 1], [], []>} : vector<64x128xf32>, vector<128x32xf32>, vector<64x32xf32> -> vector<64x32xf32>
    %271 = arith.addf %139, %270 : vector<64x32xf32>
    %c0_80 = arith.constant 0 : index
    %c0_81 = arith.constant 0 : index
    %272 = vector.load %arg11[%c0_80, %c0_81] : memref<1x128xf32, #tpu.memory_space<vmem>>, vector<1x128xf32>
    %273 = vector.shape_cast %272 : vector<1x128xf32> to vector<1x128xf32>
    %274 = vector.broadcast %273 : vector<1x128xf32> to vector<8x128xf32>
    %275 = vector.extract_strided_slice %271 {offsets = [0, 0], sizes = [8, 32], strides = [1, 1]} : vector<64x32xf32> to vector<8x32xf32>
    %c0_82 = arith.constant 0 : index
    %c0_83 = arith.constant 0 : index
    %276 = vector.load %arg10[%c0_82, %c0_83] : memref<256x128xf32, #tpu.memory_space<vmem>>, vector<32x128xf32>
    %cst_84 = arith.constant dense<0.000000e+00> : vector<8x128xf32>
    %277 = tpu.matmul %275, %276, %cst_84 {dimension_numbers = #tpu.dot_dimension_numbers<[1], [0], [0], [1], [0, 0, 1, 1], [], []>} : vector<8x32xf32>, vector<32x128xf32>, vector<8x128xf32> -> vector<8x128xf32>
    %278 = arith.addf %274, %277 : vector<8x128xf32>
    %279 = vector.extract_strided_slice %271 {offsets = [8, 0], sizes = [8, 32], strides = [1, 1]} : vector<64x32xf32> to vector<8x32xf32>
    %c32 = arith.constant 32 : index
    %c0_85 = arith.constant 0 : index
    %280 = vector.load %arg10[%c32, %c0_85] : memref<256x128xf32, #tpu.memory_space<vmem>>, vector<32x128xf32>
    %cst_86 = arith.constant dense<0.000000e+00> : vector<8x128xf32>
    %281 = tpu.matmul %279, %280, %cst_86 {dimension_numbers = #tpu.dot_dimension_numbers<[1], [0], [0], [1], [0, 0, 1, 1], [], []>} : vector<8x32xf32>, vector<32x128xf32>, vector<8x128xf32> -> vector<8x128xf32>
    %282 = arith.addf %278, %281 : vector<8x128xf32>
    %283 = vector.extract_strided_slice %271 {offsets = [16, 0], sizes = [8, 32], strides = [1, 1]} : vector<64x32xf32> to vector<8x32xf32>
    %c64 = arith.constant 64 : index
    %c0_87 = arith.constant 0 : index
    %284 = vector.load %arg10[%c64, %c0_87] : memref<256x128xf32, #tpu.memory_space<vmem>>, vector<32x128xf32>
    %cst_88 = arith.constant dense<0.000000e+00> : vector<8x128xf32>
    %285 = tpu.matmul %283, %284, %cst_88 {dimension_numbers = #tpu.dot_dimension_numbers<[1], [0], [0], [1], [0, 0, 1, 1], [], []>} : vector<8x32xf32>, vector<32x128xf32>, vector<8x128xf32> -> vector<8x128xf32>
    %286 = arith.addf %282, %285 : vector<8x128xf32>
    %287 = vector.extract_strided_slice %271 {offsets = [24, 0], sizes = [8, 32], strides = [1, 1]} : vector<64x32xf32> to vector<8x32xf32>
    %c96 = arith.constant 96 : index
    %c0_89 = arith.constant 0 : index
    %288 = vector.load %arg10[%c96, %c0_89] : memref<256x128xf32, #tpu.memory_space<vmem>>, vector<32x128xf32>
    %cst_90 = arith.constant dense<0.000000e+00> : vector<8x128xf32>
    %289 = tpu.matmul %287, %288, %cst_90 {dimension_numbers = #tpu.dot_dimension_numbers<[1], [0], [0], [1], [0, 0, 1, 1], [], []>} : vector<8x32xf32>, vector<32x128xf32>, vector<8x128xf32> -> vector<8x128xf32>
    %290 = arith.addf %286, %289 : vector<8x128xf32>
    %291 = vector.extract_strided_slice %271 {offsets = [32, 0], sizes = [8, 32], strides = [1, 1]} : vector<64x32xf32> to vector<8x32xf32>
    %c128 = arith.constant 128 : index
    %c0_91 = arith.constant 0 : index
    %292 = vector.load %arg10[%c128, %c0_91] : memref<256x128xf32, #tpu.memory_space<vmem>>, vector<32x128xf32>
    %cst_92 = arith.constant dense<0.000000e+00> : vector<8x128xf32>
    %293 = tpu.matmul %291, %292, %cst_92 {dimension_numbers = #tpu.dot_dimension_numbers<[1], [0], [0], [1], [0, 0, 1, 1], [], []>} : vector<8x32xf32>, vector<32x128xf32>, vector<8x128xf32> -> vector<8x128xf32>
    %294 = arith.addf %290, %293 : vector<8x128xf32>
    %295 = vector.extract_strided_slice %271 {offsets = [40, 0], sizes = [8, 32], strides = [1, 1]} : vector<64x32xf32> to vector<8x32xf32>
    %c160 = arith.constant 160 : index
    %c0_93 = arith.constant 0 : index
    %296 = vector.load %arg10[%c160, %c0_93] : memref<256x128xf32, #tpu.memory_space<vmem>>, vector<32x128xf32>
    %cst_94 = arith.constant dense<0.000000e+00> : vector<8x128xf32>
    %297 = tpu.matmul %295, %296, %cst_94 {dimension_numbers = #tpu.dot_dimension_numbers<[1], [0], [0], [1], [0, 0, 1, 1], [], []>} : vector<8x32xf32>, vector<32x128xf32>, vector<8x128xf32> -> vector<8x128xf32>
    %298 = arith.addf %294, %297 : vector<8x128xf32>
    %299 = vector.extract_strided_slice %271 {offsets = [48, 0], sizes = [8, 32], strides = [1, 1]} : vector<64x32xf32> to vector<8x32xf32>
    %c192 = arith.constant 192 : index
    %c0_95 = arith.constant 0 : index
    %300 = vector.load %arg10[%c192, %c0_95] : memref<256x128xf32, #tpu.memory_space<vmem>>, vector<32x128xf32>
    %cst_96 = arith.constant dense<0.000000e+00> : vector<8x128xf32>
    %301 = tpu.matmul %299, %300, %cst_96 {dimension_numbers = #tpu.dot_dimension_numbers<[1], [0], [0], [1], [0, 0, 1, 1], [], []>} : vector<8x32xf32>, vector<32x128xf32>, vector<8x128xf32> -> vector<8x128xf32>
    %302 = arith.addf %298, %301 : vector<8x128xf32>
    %c0_97 = arith.constant 0 : index
    %c0_98 = arith.constant 0 : index
    %303 = vector.load %arg12[%c0_97, %c0_98] : memref<8x128xf32, #tpu.memory_space<vmem>>, vector<8x128xf32>
    tpu.vector_store %arg12[%c0_97, %c0_98], %302 {strides = array<i32>} : memref<8x128xf32, #tpu.memory_space<vmem>>, vector<8x128xf32>,
    return
  }
  func.func @transform_0(%arg0: i32) -> (i32, i32) {
    %c0_i32 = arith.constant 0 : i32
    %c0_i32_0 = arith.constant 0 : i32
    %c0_i32_1 = arith.constant 0 : i32
    return %c0_i32, %c0_i32_0 : i32, i32
  }
  func.func @transform_1(%arg0: i32) -> (i32, i32) {
    %c0_i32 = arith.constant 0 : i32
    %c0_i32_0 = arith.constant 0 : i32
    %c0_i32_1 = arith.constant 0 : i32
    return %c0_i32, %c0_i32_0 : i32, i32
  }
  func.func @transform_2(%arg0: i32) -> (i32, i32) {
    %c0_i32 = arith.constant 0 : i32
    %c0_i32_0 = arith.constant 0 : i32
    %c0_i32_1 = arith.constant 0 : i32
    return %c0_i32, %c0_i32_0 : i32, i32
  }
  func.func @transform_3(%arg0: i32) -> (i32, i32) {
    %c0_i32 = arith.constant 0 : i32
    %c0_i32_0 = arith.constant 0 : i32
    %c0_i32_1 = arith.constant 0 : i32
    return %c0_i32, %c0_i32_0 : i32, i32
  }
  func.func @transform_4(%arg0: i32) -> (i32, i32) {
    %c0_i32 = arith.constant 0 : i32
    %c0_i32_0 = arith.constant 0 : i32
    %c0_i32_1 = arith.constant 0 : i32
    return %c0_i32, %c0_i32_0 : i32, i32
  }
  func.func @transform_5(%arg0: i32) -> (i32, i32) {
    %c0_i32 = arith.constant 0 : i32
    %c0_i32_0 = arith.constant 0 : i32
    %c0_i32_1 = arith.constant 0 : i32
    return %c0_i32, %c0_i32_0 : i32, i32
  }
  func.func @transform_6(%arg0: i32) -> (i32, i32) {
    %c0_i32 = arith.constant 0 : i32
    %c0_i32_0 = arith.constant 0 : i32
    %c0_i32_1 = arith.constant 0 : i32
    return %c0_i32, %c0_i32_0 : i32, i32
  }
  func.func @transform_7(%arg0: i32) -> (i32, i32) {
    %c0_i32 = arith.constant 0 : i32
    %c0_i32_0 = arith.constant 0 : i32
    %c0_i32_1 = arith.constant 0 : i32
    return %c0_i32, %c0_i32_0 : i32, i32
  }
  func.func @transform_8(%arg0: i32) -> (i32, i32) {
    %c0_i32 = arith.constant 0 : i32
    %c0_i32_0 = arith.constant 0 : i32
    %c0_i32_1 = arith.constant 0 : i32
    return %c0_i32, %c0_i32_0 : i32, i32
  }
  func.func @transform_9(%arg0: i32) -> (i32, i32) {
    %c0_i32 = arith.constant 0 : i32
    %c0_i32_0 = arith.constant 0 : i32
    %c0_i32_1 = arith.constant 0 : i32
    return %c0_i32, %c0_i32_0 : i32, i32
  }
  func.func @transform_10(%arg0: i32) -> (i32, i32) {
    %c0_i32 = arith.constant 0 : i32
    %c0_i32_0 = arith.constant 0 : i32
    %c0_i32_1 = arith.constant 0 : i32
    return %c0_i32, %c0_i32_0 : i32, i32
  }
  func.func @transform_11(%arg0: i32) -> (i32, i32) {
    %c0_i32 = arith.constant 0 : i32
    %c0_i32_0 = arith.constant 0 : i32
    %c0_i32_1 = arith.constant 0 : i32
    return %c0_i32, %c0_i32_0 : i32, i32
  }
}

</mosaic_0001>

<llo_original>
// kernel: affirm_forward.1
$region0: #{affirm_forward.1}
  #allocation0 [shape = 'u32[]', space=smem, size = 0x4, offset = 0x4, fixed_abs, tag = 'smem constant byte address 0x4 - core index']
  #allocation1 [shape = 'u32[72,128]{1,0:T(1,128)}', space=vmem, size = 0x9000, scoped, tag = 'internal scratch']
  %s0 = inlined_call_operand.vmem [shape: f32[64,8], index: 0, kind: input, shape index: {}]
  %s1 = inlined_call_operand.vmem [shape: f32[8,32], index: 1, kind: input, shape index: {}]
  %s2 = inlined_call_operand.vmem [shape: f32[1,32], index: 2, kind: input, shape index: {}]
  %s3 = inlined_call_operand.vmem [shape: f32[2,32], index: 3, kind: input, shape index: {}]
  %s4 = inlined_call_operand.vmem [shape: f32[2,32], index: 4, kind: input, shape index: {}]
  %s5 = inlined_call_operand.vmem [shape: f32[24,32], index: 5, kind: input, shape index: {}]
  %s6 = inlined_call_operand.vmem [shape: f32[4,32], index: 6, kind: input, shape index: {}]
  %s7 = inlined_call_operand.vmem [shape: f32[128,64], index: 7, kind: input, shape index: {}]
  %s8 = inlined_call_operand.vmem [shape: f32[64,128], index: 8, kind: input, shape index: {}]
  %s9 = inlined_call_operand.vmem [shape: f32[256,128], index: 9, kind: input, shape index: {}]
  %s10 = inlined_call_operand.vmem [shape: f32[1,128], index: 10, kind: input, shape index: {}]
  %s11 = inlined_call_operand.vmem [shape: f32[8,128], index: 11, kind: output, shape index: {}]
  %s12 = sld [smem:[#allocation0]]
  $region54: #{affirm_forward.1} parent=0
    _
  %s14 = ssub.s32 1, %s12
  %s15 = scalar_select 0, %s14, %s12
  // Predicated region
  $region2: #{affirm_forward.1} parent=0 // pred_check
    _
  $region3: #{affirm_forward.1} parent=0 // pred_check_branch
    %17 = sbr.rel (0) target = $region5
  $region4: #{affirm_forward.1} parent=0 // pred_region
    _
  $region5: #{affirm_forward.1} parent=0 // pred_fallthru
    _
  // Predicated region
  $region6: #{affirm_forward.1} parent=0 // pred_check
    _
  $region7: #{affirm_forward.1} parent=0 // pred_check_branch
    %19 = sbr.rel (0) target = $region9
  $region8: #{affirm_forward.1} parent=0 // pred_region
    _
  $region9: #{affirm_forward.1} parent=0 // pred_fallthru
    _
  // Predicated region
  $region10: #{affirm_forward.1} parent=0 // pred_check
    _
  $region11: #{affirm_forward.1} parent=0 // pred_check_branch
    %21 = sbr.rel (0) target = $region13
  $region12: #{affirm_forward.1} parent=0 // pred_region
    _
  $region13: #{affirm_forward.1} parent=0 // pred_fallthru
    _
  // Predicated region
  $region14: #{affirm_forward.1} parent=0 // pred_check
    _
  $region15: #{affirm_forward.1} parent=0 // pred_check_branch
    %23 = sbr.rel (0) target = $region17
  $region16: #{affirm_forward.1} parent=0 // pred_region
    _
  $region17: #{affirm_forward.1} parent=0 // pred_fallthru
    _
  // Predicated region
  $region18: #{affirm_forward.1} parent=0 // pred_check
    _
  $region19: #{affirm_forward.1} parent=0 // pred_check_branch
    %25 = sbr.rel (0) target = $region21
  $region20: #{affirm_forward.1} parent=0 // pred_region
    _
  $region21: #{affirm_forward.1} parent=0 // pred_fallthru
    _
  // Predicated region
  $region22: #{affirm_forward.1} parent=0 // pred_check
    _
  $region23: #{affirm_forward.1} parent=0 // pred_check_branch
    %27 = sbr.rel (0) target = $region25
  $region24: #{affirm_forward.1} parent=0 // pred_region
    _
  $region25: #{affirm_forward.1} parent=0 // pred_fallthru
    _
  // Predicated region
  $region26: #{affirm_forward.1} parent=0 // pred_check
    _
  $region27: #{affirm_forward.1} parent=0 // pred_check_branch
    %29 = sbr.rel (0) target = $region29
  $region28: #{affirm_forward.1} parent=0 // pred_region
    _
  $region29: #{affirm_forward.1} parent=0 // pred_fallthru
    _
  // Predicated region
  $region30: #{affirm_forward.1} parent=0 // pred_check
    _
  $region31: #{affirm_forward.1} parent=0 // pred_check_branch
    %31 = sbr.rel (0) target = $region33
  $region32: #{affirm_forward.1} parent=0 // pred_region
    _
  $region33: #{affirm_forward.1} parent=0 // pred_fallthru
    _
  // Predicated region
  $region34: #{affirm_forward.1} parent=0 // pred_check
    _
  $region35: #{affirm_forward.1} parent=0 // pred_check_branch
    %33 = sbr.rel (0) target = $region37
  $region36: #{affirm_forward.1} parent=0 // pred_region
    _
  $region37: #{affirm_forward.1} parent=0 // pred_fallthru
    _
  // Predicated region
  $region38: #{affirm_forward.1} parent=0 // pred_check
    _
  $region39: #{affirm_forward.1} parent=0 // pred_check_branch
    %35 = sbr.rel (0) target = $region41
  $region40: #{affirm_forward.1} parent=0 // pred_region
    _
  $region41: #{affirm_forward.1} parent=0 // pred_fallthru
    _
  // Predicated region
  $region42: #{affirm_forward.1} parent=0 // pred_check
    _
  $region43: #{affirm_forward.1} parent=0 // pred_check_branch
    %37 = sbr.rel (0) target = $region45
  $region44: #{affirm_forward.1} parent=0 // pred_region
    _
  $region45: #{affirm_forward.1} parent=0 // pred_fallthru
    _
  %v38 = vld [vmem:[%s0] sm:$0xff]
  %v39 = vld [vmem:[%s0 + $0x8] sm:$0xff]
  %v40 = vld [vmem:[%s0 + $0x10] sm:$0xff]
  %v41 = vld [vmem:[%s0 + $0x18] sm:$0xff]
  %v42 = vld [vmem:[%s0 + $0x20] sm:$0xff]
  %v43 = vld [vmem:[%s0 + $0x28] sm:$0xff]
  %v44 = vld [vmem:[%s0 + $0x30] sm:$0xff]
  %v45 = vld [vmem:[%s0 + $0x38] sm:$0xff]
  %v46 = vld [vmem:[%s1] sm:$0xff]
  %v47 = vld [vmem:[%s2] sm:$0x1]
  %v49 = vperm.slane %v47, 0
  %vm51 = vcmask 64512
  %v53 = vsel %vm51, %v38, 0
  %v56 = vsel %vm51, %v39, 0
  %v59 = vsel %vm51, %v40, 0
  %v62 = vsel %vm51, %v41, 0
  %v65 = vsel %vm51, %v42, 0
  %v68 = vsel %vm51, %v43, 0
  %v71 = vsel %vm51, %v44, 0
  %v74 = vsel %vm51, %v45, 0
  %76 = vmatpush.msra.mxu0 0.0
  %77 = vmatpush.msra.mxu0 0.0
  %78 = vmatpush.msra.mxu0 0.0
  %79 = vmatpush.msra.mxu0 0.0
  %80 = vmatpush.msra.mxu0 0.0
  %81 = vmatpush.msra.mxu0 0.0
  %82 = vmatpush.msra.mxu0 0.0
  %83 = vmatpush.msra.mxu0 0.0
  %84 = vmatpush.msra.mxu0 0.0
  %85 = vmatpush.msra.mxu0 0.0
  %86 = vmatpush.msra.mxu0 0.0
  %87 = vmatpush.msra.mxu0 0.0
  %88 = vmatpush.msra.mxu0 0.0
  %89 = vmatpush.msra.mxu0 0.0
  %90 = vmatpush.msra.mxu0 0.0
  %91 = vmatpush.msra.mxu0 %v46
  %92 = vmatmul.f32.gmra.mxu0 %v53
  %v93 = vpop.f32.mrf.mxu0
  %v94 = vadd.f32 %v49, %v93
  %95 = vmatmul.f32.gmra.mxu0 %v56
  %v96 = vpop.f32.mrf.mxu0
  %v97 = vadd.f32 %v49, %v96
  %98 = vmatmul.f32.gmra.mxu0 %v59
  %v99 = vpop.f32.mrf.mxu0
  %v100 = vadd.f32 %v49, %v99
  %101 = vmatmul.f32.gmra.mxu0 %v62
  %v102 = vpop.f32.mrf.mxu0
  %v103 = vadd.f32 %v49, %v102
  %104 = vmatmul.f32.gmra.mxu0 %v65
  %v105 = vpop.f32.mrf.mxu0
  %v106 = vadd.f32 %v49, %v105
  %107 = vmatmul.f32.gmra.mxu0 %v68
  %v108 = vpop.f32.mrf.mxu0
  %v109 = vadd.f32 %v49, %v108
  %110 = vmatmul.f32.gmra.mxu0 %v71
  %v111 = vpop.f32.mrf.mxu0
  %v112 = vadd.f32 %v49, %v111
  %113 = vmatmul.f32.gmra.mxu0 %v74
  %v114 = vpop.f32.mrf.mxu0
  %v115 = vadd.f32 %v49, %v114
  %116 = vdwg.mxu0
  %v117 = vld [vmem:[%s7] sm:$0xff]
  %v118 = vld [vmem:[%s7 + $0x8] sm:$0xff]
  %v119 = vld [vmem:[%s7 + $0x10] sm:$0xff]
  %v120 = vld [vmem:[%s7 + $0x18] sm:$0xff]
  %v121 = vld [vmem:[%s7 + $0x20] sm:$0xff]
  %v122 = vld [vmem:[%s7 + $0x28] sm:$0xff]
  %v123 = vld [vmem:[%s7 + $0x30] sm:$0xff]
  %v124 = vld [vmem:[%s7 + $0x38] sm:$0xff]
  %v125 = vld [vmem:[%s7 + $0x40] sm:$0xff]
  %v126 = vld [vmem:[%s7 + $0x48] sm:$0xff]
  %v127 = vld [vmem:[%s7 + $0x50] sm:$0xff]
  %v128 = vld [vmem:[%s7 + $0x58] sm:$0xff]
  %v129 = vld [vmem:[%s7 + $0x60] sm:$0xff]
  %v130 = vld [vmem:[%s7 + $0x68] sm:$0xff]
  %v131 = vld [vmem:[%s7 + $0x70] sm:$0xff]
  %v132 = vld [vmem:[%s7 + $0x78] sm:$0xff]
  %v133 = vld [vmem:[%s8] sm:$0xff]
  %v134 = vld [vmem:[%s8 + $0x8] sm:$0xff]
  %v135 = vld [vmem:[%s8 + $0x10] sm:$0xff]
  %v136 = vld [vmem:[%s8 + $0x18] sm:$0xff]
  %v137 = vld [vmem:[%s8 + $0x20] sm:$0xff]
  %v138 = vld [vmem:[%s8 + $0x28] sm:$0xff]
  %v139 = vld [vmem:[%s8 + $0x30] sm:$0xff]
  %v140 = vld [vmem:[%s8 + $0x38] sm:$0xff]
  %v141 = vld [vmem:[%s3] sm:$0x1]
  %v142 = vperm.slane %v141, 0
  %v143 = vld [vmem:[%s4] sm:$0x1]
  %v144 = vperm.slane %v143, 0
  %v145 = vld [vmem:[%s6] sm:$0x1]
  %v146 = vperm.slane %v145, 0
  %v147 = vld [vmem:[%s6 + $0x1] sm:$0x1]
  %v148 = vperm.slane %v147, 0
  %vm149 = vcmask 261120
  %v150 = vsel %vm149, %v94, 0.0
  %151 = vadd.xlane.f32.xlu0 %v150
  %v152 = vpop.xlane.xlu0 %151
  %v153 = vsel %vm149, %v97, 0.0
  %154 = vadd.xlane.f32.xlu0 %v153
  %v155 = vpop.xlane.xlu0 %154
  %v156 = vsel %vm149, %v100, 0.0
  %157 = vadd.xlane.f32.xlu0 %v156
  %v158 = vpop.xlane.xlu0 %157
  %v159 = vsel %vm149, %v103, 0.0
  %160 = vadd.xlane.f32.xlu0 %v159
  %v161 = vpop.xlane.xlu0 %160
  %v162 = vsel %vm149, %v106, 0.0
  %163 = vadd.xlane.f32.xlu0 %v162
  %v164 = vpop.xlane.xlu0 %163
  %v165 = vsel %vm149, %v109, 0.0
  %166 = vadd.xlane.f32.xlu0 %v165
  %v167 = vpop.xlane.xlu0 %166
  %v168 = vsel %vm149, %v112, 0.0
  %169 = vadd.xlane.f32.xlu0 %v168
  %v170 = vpop.xlane.xlu0 %169
  %v171 = vsel %vm149, %v115, 0.0
  %172 = vadd.xlane.f32.xlu0 %v171
  %v173 = vpop.xlane.xlu0 %172
  %v174 = vrcp.pop 32.0
  %v175 = vmul.f32 32.0, %v174
  %v176 = vsub.f32 1.0, %v175
  %v177 = vmul.f32 %v174, %v176
  %v178 = vadd.f32 %v174, %v177
  %vm179 = vweird.f32 %v174
  %v180 = vsel %vm179, %v174, %v178
  %v181 = vmul.f32 %v152, %v180
  %v182 = vmul.f32 %v155, %v180
  %v183 = vmul.f32 %v158, %v180
  %v184 = vmul.f32 %v161, %v180
  %v185 = vmul.f32 %v164, %v180
  %v186 = vmul.f32 %v167, %v180
  %v187 = vmul.f32 %v170, %v180
  %v188 = vmul.f32 %v173, %v180
  %v189 = vsub.f32 %v94, %v181
  %v190 = vsub.f32 %v97, %v182
  %v191 = vsub.f32 %v100, %v183
  %v192 = vsub.f32 %v103, %v184
  %v193 = vsub.f32 %v106, %v185
  %v194 = vsub.f32 %v109, %v186
  %v195 = vsub.f32 %v112, %v187
  %v196 = vsub.f32 %v115, %v188
  %v197 = vmul.f32 %v189, %v189
  %v198 = vmul.f32 %v190, %v190
  %v199 = vmul.f32 %v191, %v191
  %v200 = vmul.f32 %v192, %v192
  %v201 = vmul.f32 %v193, %v193
  %v202 = vmul.f32 %v194, %v194
  %v203 = vmul.f32 %v195, %v195
  %v204 = vmul.f32 %v196, %v196
  %v205 = vsel %vm149, %v197, 0.0
  %206 = vadd.xlane.f32.xlu0 %v205
  %v207 = vpop.xlane.xlu0 %206
  %v208 = vsel %vm149, %v198, 0.0
  %209 = vadd.xlane.f32.xlu0 %v208
  %v210 = vpop.xlane.xlu0 %209
  %v211 = vsel %vm149, %v199, 0.0
  %212 = vadd.xlane.f32.xlu0 %v211
  %v213 = vpop.xlane.xlu0 %212
  %v214 = vsel %vm149, %v200, 0.0
  %215 = vadd.xlane.f32.xlu0 %v214
  %v216 = vpop.xlane.xlu0 %215
  %v217 = vsel %vm149, %v201, 0.0
  %218 = vadd.xlane.f32.xlu0 %v217
  %v219 = vpop.xlane.xlu0 %218
  %v220 = vsel %vm149, %v202, 0.0
  %221 = vadd.xlane.f32.xlu0 %v220
  %v222 = vpop.xlane.xlu0 %221
  %v223 = vsel %vm149, %v203, 0.0
  %224 = vadd.xlane.f32.xlu0 %v223
  %v225 = vpop.xlane.xlu0 %224
  %v226 = vsel %vm149, %v204, 0.0
  %227 = vadd.xlane.f32.xlu0 %v226
  %v228 = vpop.xlane.xlu0 %227
  %v229 = vmul.f32 %v207, %v180
  %v230 = vmul.f32 %v210, %v180
  %v231 = vmul.f32 %v213, %v180
  %v232 = vmul.f32 %v216, %v180
  %v233 = vmul.f32 %v219, %v180
  %v234 = vmul.f32 %v222, %v180
  %v235 = vmul.f32 %v225, %v180
  %v236 = vmul.f32 %v228, %v180
  %v237 = vadd.f32 %v229, 1e-05
  %v238 = vadd.f32 %v230, 1e-05
  %v239 = vadd.f32 %v231, 1e-05
  %v240 = vadd.f32 %v232, 1e-05
  %v241 = vadd.f32 %v233, 1e-05
  %v242 = vadd.f32 %v234, 1e-05
  %v243 = vadd.f32 %v235, 1e-05
  %v244 = vadd.f32 %v236, 1e-05
  %v245 = vrsqrt.pop %v237
  %v246 = vmul.f32 %v245, %v237
  %v247 = vmul.f32 %v246, %v245
  %v248 = vmul.f32 0.5, %v247
  %v249 = vsub.f32 1.5, %v248
  %v250 = vmul.f32 %v245, %v249
  %vm251 = vweird.f32 %v237
  %vm252 = vweird.f32 %v245
  %vm253 = vmor %vm251, %vm252
  %v254 = vsel %vm253, %v245, %v250
  %v255 = vrsqrt.pop %v238
  %v256 = vmul.f32 %v255, %v238
  %v257 = vmul.f32 %v256, %v255
  %v258 = vmul.f32 0.5, %v257
  %v259 = vsub.f32 1.5, %v258
  %v260 = vmul.f32 %v255, %v259
  %vm261 = vweird.f32 %v238
  %vm262 = vweird.f32 %v255
  %vm263 = vmor %vm261, %vm262
  %v264 = vsel %vm263, %v255, %v260
  %v265 = vrsqrt.pop %v239
  %v266 = vmul.f32 %v265, %v239
  %v267 = vmul.f32 %v266, %v265
  %v268 = vmul.f32 0.5, %v267
  %v269 = vsub.f32 1.5, %v268
  %v270 = vmul.f32 %v265, %v269
  %vm271 = vweird.f32 %v239
  %vm272 = vweird.f32 %v265
  %vm273 = vmor %vm271, %vm272
  %v274 = vsel %vm273, %v265, %v270
  %v275 = vrsqrt.pop %v240
  %v276 = vmul.f32 %v275, %v240
  %v277 = vmul.f32 %v276, %v275
  %v278 = vmul.f32 0.5, %v277
  %v279 = vsub.f32 1.5, %v278
  %v280 = vmul.f32 %v275, %v279
  %vm281 = vweird.f32 %v240
  %vm282 = vweird.f32 %v275
  %vm283 = vmor %vm281, %vm282
  %v284 = vsel %vm283, %v275, %v280
  %v285 = vrsqrt.pop %v241
  %v286 = vmul.f32 %v285, %v241
  %v287 = vmul.f32 %v286, %v285
  %v288 = vmul.f32 0.5, %v287
  %v289 = vsub.f32 1.5, %v288
  %v290 = vmul.f32 %v285, %v289
  %vm291 = vweird.f32 %v241
  %vm292 = vweird.f32 %v285
  %vm293 = vmor %vm291, %vm292
  %v294 = vsel %vm293, %v285, %v290
  %v295 = vrsqrt.pop %v242
  %v296 = vmul.f32 %v295, %v242
  %v297 = vmul.f32 %v296, %v295
  %v298 = vmul.f32 0.5, %v297
  %v299 = vsub.f32 1.5, %v298
  %v300 = vmul.f32 %v295, %v299
  %vm301 = vweird.f32 %v242
  %vm302 = vweird.f32 %v295
  %vm303 = vmor %vm301, %vm302
  %v304 = vsel %vm303, %v295, %v300
  %v305 = vrsqrt.pop %v243
  %v306 = vmul.f32 %v305, %v243
  %v307 = vmul.f32 %v306, %v305
  %v308 = vmul.f32 0.5, %v307
  %v309 = vsub.f32 1.5, %v308
  %v310 = vmul.f32 %v305, %v309
  %vm311 = vweird.f32 %v243
  %vm312 = vweird.f32 %v305
  %vm313 = vmor %vm311, %vm312
  %v314 = vsel %vm313, %v305, %v310
  %v315 = vrsqrt.pop %v244
  %v316 = vmul.f32 %v315, %v244
  %v317 = vmul.f32 %v316, %v315
  %v318 = vmul.f32 0.5, %v317
  %v319 = vsub.f32 1.5, %v318
  %v320 = vmul.f32 %v315, %v319
  %vm321 = vweird.f32 %v244
  %vm322 = vweird.f32 %v315
  %vm323 = vmor %vm321, %vm322
  %v324 = vsel %vm323, %v315, %v320
  %v325 = vmul.f32 %v189, %v254
  %v326 = vmul.f32 %v190, %v264
  %v327 = vmul.f32 %v191, %v274
  %v328 = vmul.f32 %v192, %v284
  %v329 = vmul.f32 %v193, %v294
  %v330 = vmul.f32 %v194, %v304
  %v331 = vmul.f32 %v195, %v314
  %v332 = vmul.f32 %v196, %v324
  %v333 = vmul.f32 %v325, %v142
  %v334 = vmul.f32 %v326, %v142
  %v335 = vmul.f32 %v327, %v142
  %v336 = vmul.f32 %v328, %v142
  %v337 = vmul.f32 %v329, %v142
  %v338 = vmul.f32 %v330, %v142
  %v339 = vmul.f32 %v331, %v142
  %v340 = vmul.f32 %v332, %v142
  %v341 = vadd.f32 %v333, %v144
  %v342 = vadd.f32 %v334, %v144
  %v343 = vadd.f32 %v335, %v144
  %v344 = vadd.f32 %v336, %v144
  %v345 = vadd.f32 %v337, %v144
  %v346 = vadd.f32 %v338, %v144
  %v347 = vadd.f32 %v339, %v144
  %v348 = vadd.f32 %v340, %v144
  %vm349 = vcmask 523264
  %v351 = vsel %vm349, %v117, 0
  %v354 = vsel %vm349, %v118, 0
  %v357 = vsel %vm349, %v119, 0
  %v360 = vsel %vm349, %v120, 0
  %v363 = vsel %vm349, %v121, 0
  %v366 = vsel %vm349, %v122, 0
  %v369 = vsel %vm349, %v123, 0
  %v372 = vsel %vm349, %v124, 0
  %v375 = vsel %vm349, %v125, 0
  %v378 = vsel %vm349, %v126, 0
  %v381 = vsel %vm349, %v127, 0
  %v384 = vsel %vm349, %v128, 0
  %v387 = vsel %vm349, %v129, 0
  %v390 = vsel %vm349, %v130, 0
  %v393 = vsel %vm349, %v131, 0
  %v396 = vsel %vm349, %v132, 0
  %398 = vmatpush.msra.mxu0 0.0
  %399 = vmatpush.msra.mxu0 0.0
  %400 = vmatpush.msra.mxu0 0.0
  %401 = vmatpush.msra.mxu0 0.0
  %402 = vmatpush.msra.mxu0 0.0
  %403 = vmatpush.msra.mxu0 0.0
  %404 = vmatpush.msra.mxu0 0.0
  %405 = vmatpush.msra.mxu0 0.0
  %406 = vmatpush.msra.mxu0 %v348
  %407 = vmatpush.msra.mxu0 %v347
  %408 = vmatpush.msra.mxu0 %v346
  %409 = vmatpush.msra.mxu0 %v345
  %410 = vmatpush.msra.mxu0 %v344
  %411 = vmatpush.msra.mxu0 %v343
  %412 = vmatpush.msra.mxu0 %v342
  %413 = vmatpush.msra.mxu0 %v341
  %414 = vmatmul.f32.gmra.mxu0 %v351
  %v415 = vpop.f32.mrf.mxu0
  %v416 = vadd.f32 0.0, %v415
  %417 = vmatmul.f32.gmra.mxu0 %v354
  %v418 = vpop.f32.mrf.mxu0
  %v419 = vadd.f32 0.0, %v418
  %420 = vmatmul.f32.gmra.mxu0 %v357
  %v421 = vpop.f32.mrf.mxu0
  %v422 = vadd.f32 0.0, %v421
  %423 = vmatmul.f32.gmra.mxu0 %v360
  %v424 = vpop.f32.mrf.mxu0
  %v425 = vadd.f32 0.0, %v424
  %426 = vmatmul.f32.gmra.mxu0 %v363
  %v427 = vpop.f32.mrf.mxu0
  %v428 = vadd.f32 0.0, %v427
  %429 = vmatmul.f32.gmra.mxu0 %v366
  %v430 = vpop.f32.mrf.mxu0
  %v431 = vadd.f32 0.0, %v430
  %432 = vmatmul.f32.gmra.mxu0 %v369
  %v433 = vpop.f32.mrf.mxu0
  %v434 = vadd.f32 0.0, %v433
  %435 = vmatmul.f32.gmra.mxu0 %v372
  %v436 = vpop.f32.mrf.mxu0
  %v437 = vadd.f32 0.0, %v436
  %438 = vmatmul.f32.gmra.mxu0 %v375
  %v439 = vpop.f32.mrf.mxu0
  %v440 = vadd.f32 0.0, %v439
  %441 = vmatmul.f32.gmra.mxu0 %v378
  %v442 = vpop.f32.mrf.mxu0
  %v443 = vadd.f32 0.0, %v442
  %444 = vmatmul.f32.gmra.mxu0 %v381
  %v445 = vpop.f32.mrf.mxu0
  %v446 = vadd.f32 0.0, %v445
  %447 = vmatmul.f32.gmra.mxu0 %v384
  %v448 = vpop.f32.mrf.mxu0
  %v449 = vadd.f32 0.0, %v448
  %450 = vmatmul.f32.gmra.mxu0 %v387
  %v451 = vpop.f32.mrf.mxu0
  %v452 = vadd.f32 0.0, %v451
  %453 = vmatmul.f32.gmra.mxu0 %v390
  %v454 = vpop.f32.mrf.mxu0
  %v455 = vadd.f32 0.0, %v454
  %456 = vmatmul.f32.gmra.mxu0 %v393
  %v457 = vpop.f32.mrf.mxu0
  %v458 = vadd.f32 0.0, %v457
  %459 = vmatmul.f32.gmra.mxu0 %v396
  %v460 = vpop.f32.mrf.mxu0
  %v461 = vadd.f32 0.0, %v460
  %462 = vdwg.mxu0
  %v463 = vmul.f32 %v416, %v146
  %v464 = vmul.f32 %v419, %v146
  %v465 = vmul.f32 %v422, %v146
  %v466 = vmul.f32 %v425, %v146
  %v467 = vmul.f32 %v428, %v146
  %v468 = vmul.f32 %v431, %v146
  %v469 = vmul.f32 %v434, %v146
  %v470 = vmul.f32 %v437, %v146
  %v471 = vmul.f32 %v440, %v146
  %v472 = vmul.f32 %v443, %v146
  %v473 = vmul.f32 %v446, %v146
  %v474 = vmul.f32 %v449, %v146
  %v475 = vmul.f32 %v452, %v146
  %v476 = vmul.f32 %v455, %v146
  %v477 = vmul.f32 %v458, %v146
  %v478 = vmul.f32 %v461, %v146
  %v479 = vmul.f32 %v416, %v148
  %v480 = vmul.f32 %v419, %v148
  %v481 = vmul.f32 %v422, %v148
  %v482 = vmul.f32 %v425, %v148
  %v483 = vmul.f32 %v428, %v148
  %v484 = vmul.f32 %v431, %v148
  %v485 = vmul.f32 %v434, %v148
  %v486 = vmul.f32 %v437, %v148
  %v487 = vmul.f32 %v440, %v148
  %v488 = vmul.f32 %v443, %v148
  %v489 = vmul.f32 %v446, %v148
  %v490 = vmul.f32 %v449, %v148
  %v491 = vmul.f32 %v452, %v148
  %v492 = vmul.f32 %v455, %v148
  %v493 = vmul.f32 %v458, %v148
  %v494 = vmul.f32 %v461, %v148
  %v495 = vld [vmem:[%s5] sm:$0x1]
  %v496 = vperm.slane %v495, 0
  %v497 = vld [vmem:[%s5 + $0x1] sm:$0x1]
  %v498 = vperm.slane %v497, 0
  %v499 = vld [vmem:[%s5 + $0x2] sm:$0x1]
  %v500 = vperm.slane %v499, 0
  %v501 = vld [vmem:[%s5 + $0x3] sm:$0x1]
  %v502 = vperm.slane %v501, 0
  %v503 = vmul.f32 %v416, %v496
  %v504 = vmul.f32 %v419, %v496
  %v505 = vmul.f32 %v422, %v496
  %v506 = vmul.f32 %v425, %v496
  %v507 = vmul.f32 %v428, %v496
  %v508 = vmul.f32 %v431, %v496
  %v509 = vmul.f32 %v434, %v496
  %v510 = vmul.f32 %v437, %v496
  %v511 = vmul.f32 %v440, %v498
  %v512 = vmul.f32 %v443, %v498
  %v513 = vmul.f32 %v446, %v498
  %v514 = vmul.f32 %v449, %v498
  %v515 = vmul.f32 %v452, %v498
  %v516 = vmul.f32 %v455, %v498
  %v517 = vmul.f32 %v458, %v498
  %v518 = vmul.f32 %v461, %v498
  %v519 = vsub.f32 %v503, %v511
  %v520 = vsub.f32 %v504, %v512
  %v521 = vsub.f32 %v505, %v513
  %v522 = vsub.f32 %v506, %v514
  %v523 = vsub.f32 %v507, %v515
  %v524 = vsub.f32 %v508, %v516
  %v525 = vsub.f32 %v509, %v517
  %v526 = vsub.f32 %v510, %v518
  %v527 = vmax.f32 %v519, 0.0
  %v528 = vmax.f32 %v520, 0.0
  %v529 = vmax.f32 %v521, 0.0
  %v530 = vmax.f32 %v522, 0.0
  %v531 = vmax.f32 %v523, 0.0
  %v532 = vmax.f32 %v524, 0.0
  %v533 = vmax.f32 %v525, 0.0
  %v534 = vmax.f32 %v526, 0.0
  %v535 = vmul.f32 %v416, %v498
  %v536 = vmul.f32 %v419, %v498
  %v537 = vmul.f32 %v422, %v498
  %v538 = vmul.f32 %v425, %v498
  %v539 = vmul.f32 %v428, %v498
  %v540 = vmul.f32 %v431, %v498
  %v541 = vmul.f32 %v434, %v498
  %v542 = vmul.f32 %v437, %v498
  %v543 = vmul.f32 %v440, %v496
  %v544 = vmul.f32 %v443, %v496
  %v545 = vmul.f32 %v446, %v496
  %v546 = vmul.f32 %v449, %v496
  %v547 = vmul.f32 %v452, %v496
  %v548 = vmul.f32 %v455, %v496
  %v549 = vmul.f32 %v458, %v496
  %v550 = vmul.f32 %v461, %v496
  %v551 = vadd.f32 %v535, %v543
  %v552 = vadd.f32 %v536, %v544
  %v553 = vadd.f32 %v537, %v545
  %v554 = vadd.f32 %v538, %v546
  %v555 = vadd.f32 %v539, %v547
  %v556 = vadd.f32 %v540, %v548
  %v557 = vadd.f32 %v541, %v549
  %v558 = vadd.f32 %v542, %v550
  %v559 = vmax.f32 %v551, 0.0
  %v560 = vmax.f32 %v552, 0.0
  %v561 = vmax.f32 %v553, 0.0
  %v562 = vmax.f32 %v554, 0.0
  %v563 = vmax.f32 %v555, 0.0
  %v564 = vmax.f32 %v556, 0.0
  %v565 = vmax.f32 %v557, 0.0
  %v566 = vmax.f32 %v558, 0.0
  %v567 = vmul.f32 %v527, %v500
  %v568 = vmul.f32 %v528, %v500
  %v569 = vmul.f32 %v529, %v500
  %v570 = vmul.f32 %v530, %v500
  %v571 = vmul.f32 %v531, %v500
  %v572 = vmul.f32 %v532, %v500
  %v573 = vmul.f32 %v533, %v500
  %v574 = vmul.f32 %v534, %v500
  %v575 = vadd.f32 %v567, 0.0
  %v576 = vadd.f32 %v568, 0.0
  %v577 = vadd.f32 %v569, 0.0
  %v578 = vadd.f32 %v570, 0.0
  %v579 = vadd.f32 %v571, 0.0
  %v580 = vadd.f32 %v572, 0.0
  %v581 = vadd.f32 %v573, 0.0
  %v582 = vadd.f32 %v574, 0.0
  %v583 = vmul.f32 %v559, %v502
  %v584 = vmul.f32 %v560, %v502
  %v585 = vmul.f32 %v561, %v502
  %v586 = vmul.f32 %v562, %v502
  %v587 = vmul.f32 %v563, %v502
  %v588 = vmul.f32 %v564, %v502
  %v589 = vmul.f32 %v565, %v502
  %v590 = vmul.f32 %v566, %v502
  %v591 = vsub.f32 %v575, %v583
  %v592 = vsub.f32 %v576, %v584
  %v593 = vsub.f32 %v577, %v585
  %v594 = vsub.f32 %v578, %v586
  %v595 = vsub.f32 %v579, %v587
  %v596 = vsub.f32 %v580, %v588
  %v597 = vsub.f32 %v581, %v589
  %v598 = vsub.f32 %v582, %v590
  %v599 = vmul.f32 %v527, %v502
  %v600 = vmul.f32 %v528, %v502
  %v601 = vmul.f32 %v529, %v502
  %v602 = vmul.f32 %v530, %v502
  %v603 = vmul.f32 %v531, %v502
  %v604 = vmul.f32 %v532, %v502
  %v605 = vmul.f32 %v533, %v502
  %v606 = vmul.f32 %v534, %v502
  %v607 = vadd.f32 %v599, 0.0
  %v608 = vadd.f32 %v600, 0.0
  %v609 = vadd.f32 %v601, 0.0
  %v610 = vadd.f32 %v602, 0.0
  %v611 = vadd.f32 %v603, 0.0
  %v612 = vadd.f32 %v604, 0.0
  %v613 = vadd.f32 %v605, 0.0
  %v614 = vadd.f32 %v606, 0.0
  %v615 = vmul.f32 %v559, %v500
  %v616 = vmul.f32 %v560, %v500
  %v617 = vmul.f32 %v561, %v500
  %v618 = vmul.f32 %v562, %v500
  %v619 = vmul.f32 %v563, %v500
  %v620 = vmul.f32 %v564, %v500
  %v621 = vmul.f32 %v565, %v500
  %v622 = vmul.f32 %v566, %v500
  %v623 = vadd.f32 %v607, %v615
  %v624 = vadd.f32 %v608, %v616
  %v625 = vadd.f32 %v609, %v617
  %v626 = vadd.f32 %v610, %v618
  %v627 = vadd.f32 %v611, %v619
  %v628 = vadd.f32 %v612, %v620
  %v629 = vadd.f32 %v613, %v621
  %v630 = vadd.f32 %v614, %v622
  %v631 = vld [vmem:[%s5 + $0x4] sm:$0x1]
  %v632 = vperm.slane %v631, 0
  %v633 = vld [vmem:[%s5 + $0x5] sm:$0x1]
  %v634 = vperm.slane %v633, 0
  %v635 = vld [vmem:[%s5 + $0x6] sm:$0x1]
  %v636 = vperm.slane %v635, 0
  %v637 = vld [vmem:[%s5 + $0x7] sm:$0x1]
  %v638 = vperm.slane %v637, 0
  %v639 = vmul.f32 %v463, %v632
  %v640 = vmul.f32 %v464, %v632
  %v641 = vmul.f32 %v465, %v632
  %v642 = vmul.f32 %v466, %v632
  %v643 = vmul.f32 %v467, %v632
  %v644 = vmul.f32 %v468, %v632
  %v645 = vmul.f32 %v469, %v632
  %v646 = vmul.f32 %v470, %v632
  %v647 = vmul.f32 %v471, %v634
  %v648 = vmul.f32 %v472, %v634
  %v649 = vmul.f32 %v473, %v634
  %v650 = vmul.f32 %v474, %v634
  %v651 = vmul.f32 %v475, %v634
  %v652 = vmul.f32 %v476, %v634
  %v653 = vmul.f32 %v477, %v634
  %v654 = vmul.f32 %v478, %v634
  %v655 = vsub.f32 %v639, %v647
  %v656 = vsub.f32 %v640, %v648
  %v657 = vsub.f32 %v641, %v649
  %v658 = vsub.f32 %v642, %v650
  %v659 = vsub.f32 %v643, %v651
  %v660 = vsub.f32 %v644, %v652
  %v661 = vsub.f32 %v645, %v653
  %v662 = vsub.f32 %v646, %v654
  %v663 = vmax.f32 %v655, 0.0
  %v664 = vmax.f32 %v656, 0.0
  %v665 = vmax.f32 %v657, 0.0
  %v666 = vmax.f32 %v658, 0.0
  %v667 = vmax.f32 %v659, 0.0
  %v668 = vmax.f32 %v660, 0.0
  %v669 = vmax.f32 %v661, 0.0
  %v670 = vmax.f32 %v662, 0.0
  %v671 = vmul.f32 %v463, %v634
  %v672 = vmul.f32 %v464, %v634
  %v673 = vmul.f32 %v465, %v634
  %v674 = vmul.f32 %v466, %v634
  %v675 = vmul.f32 %v467, %v634
  %v676 = vmul.f32 %v468, %v634
  %v677 = vmul.f32 %v469, %v634
  %v678 = vmul.f32 %v470, %v634
  %v679 = vmul.f32 %v471, %v632
  %v680 = vmul.f32 %v472, %v632
  %v681 = vmul.f32 %v473, %v632
  %v682 = vmul.f32 %v474, %v632
  %v683 = vmul.f32 %v475, %v632
  %v684 = vmul.f32 %v476, %v632
  %v685 = vmul.f32 %v477, %v632
  %v686 = vmul.f32 %v478, %v632
  %v687 = vadd.f32 %v671, %v679
  %v688 = vadd.f32 %v672, %v680
  %v689 = vadd.f32 %v673, %v681
  %v690 = vadd.f32 %v674, %v682
  %v691 = vadd.f32 %v675, %v683
  %v692 = vadd.f32 %v676, %v684
  %v693 = vadd.f32 %v677, %v685
  %v694 = vadd.f32 %v678, %v686
  %v695 = vmax.f32 %v687, 0.0
  %v696 = vmax.f32 %v688, 0.0
  %v697 = vmax.f32 %v689, 0.0
  %v698 = vmax.f32 %v690, 0.0
  %v699 = vmax.f32 %v691, 0.0
  %v700 = vmax.f32 %v692, 0.0
  %v701 = vmax.f32 %v693, 0.0
  %v702 = vmax.f32 %v694, 0.0
  %v703 = vmul.f32 %v663, %v636
  %v704 = vmul.f32 %v664, %v636
  %v705 = vmul.f32 %v665, %v636
  %v706 = vmul.f32 %v666, %v636
  %v707 = vmul.f32 %v667, %v636
  %v708 = vmul.f32 %v668, %v636
  %v709 = vmul.f32 %v669, %v636
  %v710 = vmul.f32 %v670, %v636
  %v711 = vadd.f32 %v591, %v703
  %v712 = vadd.f32 %v592, %v704
  %v713 = vadd.f32 %v593, %v705
  %v714 = vadd.f32 %v594, %v706
  %v715 = vadd.f32 %v595, %v707
  %v716 = vadd.f32 %v596, %v708
  %v717 = vadd.f32 %v597, %v709
  %v718 = vadd.f32 %v598, %v710
  %v719 = vmul.f32 %v695, %v638
  %v720 = vmul.f32 %v696, %v638
  %v721 = vmul.f32 %v697, %v638
  %v722 = vmul.f32 %v698, %v638
  %v723 = vmul.f32 %v699, %v638
  %v724 = vmul.f32 %v700, %v638
  %v725 = vmul.f32 %v701, %v638
  %v726 = vmul.f32 %v702, %v638
  %v727 = vsub.f32 %v711, %v719
  %v728 = vsub.f32 %v712, %v720
  %v729 = vsub.f32 %v713, %v721
  %v730 = vsub.f32 %v714, %v722
  %v731 = vsub.f32 %v715, %v723
  %v732 = vsub.f32 %v716, %v724
  %v733 = vsub.f32 %v717, %v725
  %v734 = vsub.f32 %v718, %v726
  %v735 = vmul.f32 %v663, %v638
  %v736 = vmul.f32 %v664, %v638
  %v737 = vmul.f32 %v665, %v638
  %v738 = vmul.f32 %v666, %v638
  %v739 = vmul.f32 %v667, %v638
  %v740 = vmul.f32 %v668, %v638
  %v741 = vmul.f32 %v669, %v638
  %v742 = vmul.f32 %v670, %v638
  %v743 = vadd.f32 %v623, %v735
  %v744 = vadd.f32 %v624, %v736
  %v745 = vadd.f32 %v625, %v737
  %v746 = vadd.f32 %v626, %v738
  %v747 = vadd.f32 %v627, %v739
  %v748 = vadd.f32 %v628, %v740
  %v749 = vadd.f32 %v629, %v741
  %v750 = vadd.f32 %v630, %v742
  %v751 = vmul.f32 %v695, %v636
  %v752 = vmul.f32 %v696, %v636
  %v753 = vmul.f32 %v697, %v636
  %v754 = vmul.f32 %v698, %v636
  %v755 = vmul.f32 %v699, %v636
  %v756 = vmul.f32 %v700, %v636
  %v757 = vmul.f32 %v701, %v636
  %v758 = vmul.f32 %v702, %v636
  %v759 = vadd.f32 %v743, %v751
  %v760 = vadd.f32 %v744, %v752
  %v761 = vadd.f32 %v745, %v753
  %v762 = vadd.f32 %v746, %v754
  %v763 = vadd.f32 %v747, %v755
  %v764 = vadd.f32 %v748, %v756
  %v765 = vadd.f32 %v749, %v757
  %v766 = vadd.f32 %v750, %v758
  %v767 = vld [vmem:[%s5 + $0x8] sm:$0x1]
  %v768 = vperm.slane %v767, 0
  %v769 = vld [vmem:[%s5 + $0x9] sm:$0x1]
  %v770 = vperm.slane %v769, 0
  %v771 = vld [vmem:[%s5 + $0xa] sm:$0x1]
  %v772 = vperm.slane %v771, 0
  %v773 = vld [vmem:[%s5 + $0xb] sm:$0x1]
  %v774 = vperm.slane %v773, 0
  %v775 = vmul.f32 %v479, %v768
  %v776 = vmul.f32 %v480, %v768
  %v777 = vmul.f32 %v481, %v768
  %v778 = vmul.f32 %v482, %v768
  %v779 = vmul.f32 %v483, %v768
  %v780 = vmul.f32 %v484, %v768
  %v781 = vmul.f32 %v485, %v768
  %v782 = vmul.f32 %v486, %v768
  %v783 = vmul.f32 %v487, %v770
  %v784 = vmul.f32 %v488, %v770
  %v785 = vmul.f32 %v489, %v770
  %v786 = vmul.f32 %v490, %v770
  %v787 = vmul.f32 %v491, %v770
  %v788 = vmul.f32 %v492, %v770
  %v789 = vmul.f32 %v493, %v770
  %v790 = vmul.f32 %v494, %v770
  %v791 = vsub.f32 %v775, %v783
  %v792 = vsub.f32 %v776, %v784
  %v793 = vsub.f32 %v777, %v785
  %v794 = vsub.f32 %v778, %v786
  %v795 = vsub.f32 %v779, %v787
  %v796 = vsub.f32 %v780, %v788
  %v797 = vsub.f32 %v781, %v789
  %v798 = vsub.f32 %v782, %v790
  %v799 = vmax.f32 %v791, 0.0
  %v800 = vmax.f32 %v792, 0.0
  %v801 = vmax.f32 %v793, 0.0
  %v802 = vmax.f32 %v794, 0.0
  %v803 = vmax.f32 %v795, 0.0
  %v804 = vmax.f32 %v796, 0.0
  %v805 = vmax.f32 %v797, 0.0
  %v806 = vmax.f32 %v798, 0.0
  %v807 = vmul.f32 %v479, %v770
  %v808 = vmul.f32 %v480, %v770
  %v809 = vmul.f32 %v481, %v770
  %v810 = vmul.f32 %v482, %v770
  %v811 = vmul.f32 %v483, %v770
  %v812 = vmul.f32 %v484, %v770
  %v813 = vmul.f32 %v485, %v770
  %v814 = vmul.f32 %v486, %v770
  %v815 = vmul.f32 %v487, %v768
  %v816 = vmul.f32 %v488, %v768
  %v817 = vmul.f32 %v489, %v768
  %v818 = vmul.f32 %v490, %v768
  %v819 = vmul.f32 %v491, %v768
  %v820 = vmul.f32 %v492, %v768
  %v821 = vmul.f32 %v493, %v768
  %v822 = vmul.f32 %v494, %v768
  %v823 = vadd.f32 %v807, %v815
  %v824 = vadd.f32 %v808, %v816
  %v825 = vadd.f32 %v809, %v817
  %v826 = vadd.f32 %v810, %v818
  %v827 = vadd.f32 %v811, %v819
  %v828 = vadd.f32 %v812, %v820
  %v829 = vadd.f32 %v813, %v821
  %v830 = vadd.f32 %v814, %v822
  %v831 = vmax.f32 %v823, 0.0
  %v832 = vmax.f32 %v824, 0.0
  %v833 = vmax.f32 %v825, 0.0
  %v834 = vmax.f32 %v826, 0.0
  %v835 = vmax.f32 %v827, 0.0
  %v836 = vmax.f32 %v828, 0.0
  %v837 = vmax.f32 %v829, 0.0
  %v838 = vmax.f32 %v830, 0.0
  %v839 = vmul.f32 %v799, %v772
  %v840 = vmul.f32 %v800, %v772
  %v841 = vmul.f32 %v801, %v772
  %v842 = vmul.f32 %v802, %v772
  %v843 = vmul.f32 %v803, %v772
  %v844 = vmul.f32 %v804, %v772
  %v845 = vmul.f32 %v805, %v772
  %v846 = vmul.f32 %v806, %v772
  %v847 = vadd.f32 %v727, %v839
  %v848 = vadd.f32 %v728, %v840
  %v849 = vadd.f32 %v729, %v841
  %v850 = vadd.f32 %v730, %v842
  %v851 = vadd.f32 %v731, %v843
  %v852 = vadd.f32 %v732, %v844
  %v853 = vadd.f32 %v733, %v845
  %v854 = vadd.f32 %v734, %v846
  %v855 = vmul.f32 %v831, %v774
  %v856 = vmul.f32 %v832, %v774
  %v857 = vmul.f32 %v833, %v774
  %v858 = vmul.f32 %v834, %v774
  %v859 = vmul.f32 %v835, %v774
  %v860 = vmul.f32 %v836, %v774
  %v861 = vmul.f32 %v837, %v774
  %v862 = vmul.f32 %v838, %v774
  %v863 = vsub.f32 %v847, %v855
  %v864 = vsub.f32 %v848, %v856
  %v865 = vsub.f32 %v849, %v857
  %v866 = vsub.f32 %v850, %v858
  %v867 = vsub.f32 %v851, %v859
  %v868 = vsub.f32 %v852, %v860
  %v869 = vsub.f32 %v853, %v861
  %v870 = vsub.f32 %v854, %v862
  %v871 = vmul.f32 %v799, %v774
  %v872 = vmul.f32 %v800, %v774
  %v873 = vmul.f32 %v801, %v774
  %v874 = vmul.f32 %v802, %v774
  %v875 = vmul.f32 %v803, %v774
  %v876 = vmul.f32 %v804, %v774
  %v877 = vmul.f32 %v805, %v774
  %v878 = vmul.f32 %v806, %v774
  %v879 = vadd.f32 %v759, %v871
  %v880 = vadd.f32 %v760, %v872
  %v881 = vadd.f32 %v761, %v873
  %v882 = vadd.f32 %v762, %v874
  %v883 = vadd.f32 %v763, %v875
  %v884 = vadd.f32 %v764, %v876
  %v885 = vadd.f32 %v765, %v877
  %v886 = vadd.f32 %v766, %v878
  %v887 = vmul.f32 %v831, %v772
  %v888 = vmul.f32 %v832, %v772
  %v889 = vmul.f32 %v833, %v772
  %v890 = vmul.f32 %v834, %v772
  %v891 = vmul.f32 %v835, %v772
  %v892 = vmul.f32 %v836, %v772
  %v893 = vmul.f32 %v837, %v772
  %v894 = vmul.f32 %v838, %v772
  %v895 = vadd.f32 %v879, %v887
  %v896 = vadd.f32 %v880, %v888
  %v897 = vadd.f32 %v881, %v889
  %v898 = vadd.f32 %v882, %v890
  %v899 = vadd.f32 %v883, %v891
  %v900 = vadd.f32 %v884, %v892
  %v901 = vadd.f32 %v885, %v893
  %v902 = vadd.f32 %v886, %v894
  %903 = vmatpush.msra.mxu0 %v902
  %904 = vmatpush.msra.mxu0 %v901
  %905 = vmatpush.msra.mxu0 %v900
  %906 = vmatpush.msra.mxu0 %v899
  %907 = vmatpush.msra.mxu0 %v898
  %908 = vmatpush.msra.mxu0 %v897
  %909 = vmatpush.msra.mxu0 %v896
  %910 = vmatpush.msra.mxu0 %v895
  %911 = vmatpush.msra.mxu0 %v870
  %912 = vmatpush.msra.mxu0 %v869
  %913 = vmatpush.msra.mxu0 %v868
  %914 = vmatpush.msra.mxu0 %v867
  %915 = vmatpush.msra.mxu0 %v866
  %916 = vmatpush.msra.mxu0 %v865
  %917 = vmatpush.msra.mxu0 %v864
  %918 = vmatpush.msra.mxu0 %v863
  %919 = vmatmul.f32.gmra.mxu0 %v133
  %v920 = vpop.f32.mrf.mxu0
  %v921 = vadd.f32 0.0, %v920
  %922 = vmatmul.f32.gmra.mxu0 %v134
  %v923 = vpop.f32.mrf.mxu0
  %v924 = vadd.f32 0.0, %v923
  %925 = vmatmul.f32.gmra.mxu0 %v135
  %v926 = vpop.f32.mrf.mxu0
  %v927 = vadd.f32 0.0, %v926
  %928 = vmatmul.f32.gmra.mxu0 %v136
  %v929 = vpop.f32.mrf.mxu0
  %v930 = vadd.f32 0.0, %v929
  %931 = vmatmul.f32.gmra.mxu0 %v137
  %v932 = vpop.f32.mrf.mxu0
  %v933 = vadd.f32 0.0, %v932
  %934 = vmatmul.f32.gmra.mxu0 %v138
  %v935 = vpop.f32.mrf.mxu0
  %v936 = vadd.f32 0.0, %v935
  %937 = vmatmul.f32.gmra.mxu0 %v139
  %v938 = vpop.f32.mrf.mxu0
  %v939 = vadd.f32 0.0, %v938
  %940 = vmatmul.f32.gmra.mxu0 %v140
  %v941 = vpop.f32.mrf.mxu0
  %v942 = vadd.f32 0.0, %v941
  %943 = vdwg.mxu0
  %v944 = vadd.f32 %v94, %v921
  %v945 = vadd.f32 %v97, %v924
  %v946 = vadd.f32 %v100, %v927
  %v947 = vadd.f32 %v103, %v930
  %v948 = vadd.f32 %v106, %v933
  %v949 = vadd.f32 %v109, %v936
  %v950 = vadd.f32 %v112, %v939
  %v951 = vadd.f32 %v115, %v942
  %v952 = vld [vmem:[%s3 + $0x1] sm:$0x1]
  %v953 = vperm.slane %v952, 0
  %v954 = vld [vmem:[%s4 + $0x1] sm:$0x1]
  %v955 = vperm.slane %v954, 0
  %v956 = vld [vmem:[%s6 + $0x2] sm:$0x1]
  %v957 = vperm.slane %v956, 0
  %v958 = vld [vmem:[%s6 + $0x3] sm:$0x1]
  %v959 = vperm.slane %v958, 0
  %v960 = vsel %vm149, %v944, 0.0
  %961 = vadd.xlane.f32.xlu0 %v960
  %v962 = vpop.xlane.xlu0 %961
  %v963 = vsel %vm149, %v945, 0.0
  %964 = vadd.xlane.f32.xlu0 %v963
  %v965 = vpop.xlane.xlu0 %964
  %v966 = vsel %vm149, %v946, 0.0
  %967 = vadd.xlane.f32.xlu0 %v966
  %v968 = vpop.xlane.xlu0 %967
  %v969 = vsel %vm149, %v947, 0.0
  %970 = vadd.xlane.f32.xlu0 %v969
  %v971 = vpop.xlane.xlu0 %970
  %v972 = vsel %vm149, %v948, 0.0
  %973 = vadd.xlane.f32.xlu0 %v972
  %v974 = vpop.xlane.xlu0 %973
  %v975 = vsel %vm149, %v949, 0.0
  %976 = vadd.xlane.f32.xlu0 %v975
  %v977 = vpop.xlane.xlu0 %976
  %v978 = vsel %vm149, %v950, 0.0
  %979 = vadd.xlane.f32.xlu0 %v978
  %v980 = vpop.xlane.xlu0 %979
  %v981 = vsel %vm149, %v951, 0.0
  %982 = vadd.xlane.f32.xlu0 %v981
  %v983 = vpop.xlane.xlu0 %982
  %v984 = vmul.f32 %v962, %v180
  %v985 = vmul.f32 %v965, %v180
  %v986 = vmul.f32 %v968, %v180
  %v987 = vmul.f32 %v971, %v180
  %v988 = vmul.f32 %v974, %v180
  %v989 = vmul.f32 %v977, %v180
  %v990 = vmul.f32 %v980, %v180
  %v991 = vmul.f32 %v983, %v180
  %v992 = vsub.f32 %v944, %v984
  %v993 = vsub.f32 %v945, %v985
  %v994 = vsub.f32 %v946, %v986
  %v995 = vsub.f32 %v947, %v987
  %v996 = vsub.f32 %v948, %v988
  %v997 = vsub.f32 %v949, %v989
  %v998 = vsub.f32 %v950, %v990
  %v999 = vsub.f32 %v951, %v991
  %v1000 = vmul.f32 %v992, %v992
  %v1001 = vmul.f32 %v993, %v993
  %v1002 = vmul.f32 %v994, %v994
  %v1003 = vmul.f32 %v995, %v995
  %v1004 = vmul.f32 %v996, %v996
  %v1005 = vmul.f32 %v997, %v997
  %v1006 = vmul.f32 %v998, %v998
  %v1007 = vmul.f32 %v999, %v999
  %v1008 = vsel %vm149, %v1000, 0.0
  %1009 = vadd.xlane.f32.xlu0 %v1008
  %v1010 = vpop.xlane.xlu0 %1009
  %v1011 = vsel %vm149, %v1001, 0.0
  %1012 = vadd.xlane.f32.xlu0 %v1011
  %v1013 = vpop.xlane.xlu0 %1012
  %v1014 = vsel %vm149, %v1002, 0.0
  %1015 = vadd.xlane.f32.xlu0 %v1014
  %v1016 = vpop.xlane.xlu0 %1015
  %v1017 = vsel %vm149, %v1003, 0.0
  %1018 = vadd.xlane.f32.xlu0 %v1017
  %v1019 = vpop.xlane.xlu0 %1018
  %v1020 = vsel %vm149, %v1004, 0.0
  %1021 = vadd.xlane.f32.xlu0 %v1020
  %v1022 = vpop.xlane.xlu0 %1021
  %v1023 = vsel %vm149, %v1005, 0.0
  %1024 = vadd.xlane.f32.xlu0 %v1023
  %v1025 = vpop.xlane.xlu0 %1024
  %v1026 = vsel %vm149, %v1006, 0.0
  %1027 = vadd.xlane.f32.xlu0 %v1026
  %v1028 = vpop.xlane.xlu0 %1027
  %v1029 = vsel %vm149, %v1007, 0.0
  %1030 = vadd.xlane.f32.xlu0 %v1029
  %v1031 = vpop.xlane.xlu0 %1030
  %v1032 = vmul.f32 %v1010, %v180
  %v1033 = vmul.f32 %v1013, %v180
  %v1034 = vmul.f32 %v1016, %v180
  %v1035 = vmul.f32 %v1019, %v180
  %v1036 = vmul.f32 %v1022, %v180
  %v1037 = vmul.f32 %v1025, %v180
  %v1038 = vmul.f32 %v1028, %v180
  %v1039 = vmul.f32 %v1031, %v180
  %v1040 = vadd.f32 %v1032, 1e-05
  %v1041 = vadd.f32 %v1033, 1e-05
  %v1042 = vadd.f32 %v1034, 1e-05
  %v1043 = vadd.f32 %v1035, 1e-05
  %v1044 = vadd.f32 %v1036, 1e-05
  %v1045 = vadd.f32 %v1037, 1e-05
  %v1046 = vadd.f32 %v1038, 1e-05
  %v1047 = vadd.f32 %v1039, 1e-05
  %v1048 = vrsqrt.pop %v1040
  %v1049 = vmul.f32 %v1048, %v1040
  %v1050 = vmul.f32 %v1049, %v1048
  %v1051 = vmul.f32 0.5, %v1050
  %v1052 = vsub.f32 1.5, %v1051
  %v1053 = vmul.f32 %v1048, %v1052
  %vm1054 = vweird.f32 %v1040
  %vm1055 = vweird.f32 %v1048
  %vm1056 = vmor %vm1054, %vm1055
  %v1057 = vsel %vm1056, %v1048, %v1053
  %v1058 = vrsqrt.pop %v1041
  %v1059 = vmul.f32 %v1058, %v1041
  %v1060 = vmul.f32 %v1059, %v1058
  %v1061 = vmul.f32 0.5, %v1060
  %v1062 = vsub.f32 1.5, %v1061
  %v1063 = vmul.f32 %v1058, %v1062
  %vm1064 = vweird.f32 %v1041
  %vm1065 = vweird.f32 %v1058
  %vm1066 = vmor %vm1064, %vm1065
  %v1067 = vsel %vm1066, %v1058, %v1063
  %v1068 = vrsqrt.pop %v1042
  %v1069 = vmul.f32 %v1068, %v1042
  %v1070 = vmul.f32 %v1069, %v1068
  %v1071 = vmul.f32 0.5, %v1070
  %v1072 = vsub.f32 1.5, %v1071
  %v1073 = vmul.f32 %v1068, %v1072
  %vm1074 = vweird.f32 %v1042
  %vm1075 = vweird.f32 %v1068
  %vm1076 = vmor %vm1074, %vm1075
  %v1077 = vsel %vm1076, %v1068, %v1073
  %v1078 = vrsqrt.pop %v1043
  %v1079 = vmul.f32 %v1078, %v1043
  %v1080 = vmul.f32 %v1079, %v1078
  %v1081 = vmul.f32 0.5, %v1080
  %v1082 = vsub.f32 1.5, %v1081
  %v1083 = vmul.f32 %v1078, %v1082
  %vm1084 = vweird.f32 %v1043
  %vm1085 = vweird.f32 %v1078
  %vm1086 = vmor %vm1084, %vm1085
  %v1087 = vsel %vm1086, %v1078, %v1083
  %v1088 = vrsqrt.pop %v1044
  %v1089 = vmul.f32 %v1088, %v1044
  %v1090 = vmul.f32 %v1089, %v1088
  %v1091 = vmul.f32 0.5, %v1090
  %v1092 = vsub.f32 1.5, %v1091
  %v1093 = vmul.f32 %v1088, %v1092
  %vm1094 = vweird.f32 %v1044
  %vm1095 = vweird.f32 %v1088
  %vm1096 = vmor %vm1094, %vm1095
  %v1097 = vsel %vm1096, %v1088, %v1093
  %v1098 = vrsqrt.pop %v1045
  %v1099 = vmul.f32 %v1098, %v1045
  %v1100 = vmul.f32 %v1099, %v1098
  %v1101 = vmul.f32 0.5, %v1100
  %v1102 = vsub.f32 1.5, %v1101
  %v1103 = vmul.f32 %v1098, %v1102
  %vm1104 = vweird.f32 %v1045
  %vm1105 = vweird.f32 %v1098
  %vm1106 = vmor %vm1104, %vm1105
  %v1107 = vsel %vm1106, %v1098, %v1103
  %v1108 = vrsqrt.pop %v1046
  %v1109 = vmul.f32 %v1108, %v1046
  %v1110 = vmul.f32 %v1109, %v1108
  %v1111 = vmul.f32 0.5, %v1110
  %v1112 = vsub.f32 1.5, %v1111
  %v1113 = vmul.f32 %v1108, %v1112
  %vm1114 = vweird.f32 %v1046
  %vm1115 = vweird.f32 %v1108
  %vm1116 = vmor %vm1114, %vm1115
  %v1117 = vsel %vm1116, %v1108, %v1113
  %v1118 = vrsqrt.pop %v1047
  %v1119 = vmul.f32 %v1118, %v1047
  %v1120 = vmul.f32 %v1119, %v1118
  %v1121 = vmul.f32 0.5, %v1120
  %v1122 = vsub.f32 1.5, %v1121
  %v1123 = vmul.f32 %v1118, %v1122
  %vm1124 = vweird.f32 %v1047
  %vm1125 = vweird.f32 %v1118
  %vm1126 = vmor %vm1124, %vm1125
  %v1127 = vsel %vm1126, %v1118, %v1123
  %v1128 = vmul.f32 %v992, %v1057
  %v1129 = vmul.f32 %v993, %v1067
  %v1130 = vmul.f32 %v994, %v1077
  %v1131 = vmul.f32 %v995, %v1087
  %v1132 = vmul.f32 %v996, %v1097
  %v1133 = vmul.f32 %v997, %v1107
  %v1134 = vmul.f32 %v998, %v1117
  %v1135 = vmul.f32 %v999, %v1127
  %v1136 = vmul.f32 %v1128, %v953
  %v1137 = vmul.f32 %v1129, %v953
  %v1138 = vmul.f32 %v1130, %v953
  %v1139 = vmul.f32 %v1131, %v953
  %v1140 = vmul.f32 %v1132, %v953
  %v1141 = vmul.f32 %v1133, %v953
  %v1142 = vmul.f32 %v1134, %v953
  %v1143 = vmul.f32 %v1135, %v953
  %v1144 = vadd.f32 %v1136, %v955
  %v1145 = vadd.f32 %v1137, %v955
  %v1146 = vadd.f32 %v1138, %v955
  %v1147 = vadd.f32 %v1139, %v955
  %v1148 = vadd.f32 %v1140, %v955
  %v1149 = vadd.f32 %v1141, %v955
  %v1150 = vadd.f32 %v1142, %v955
  %v1151 = vadd.f32 %v1143, %v955
  %1152 = vmatpush.msra.mxu0 0.0
  %1153 = vmatpush.msra.mxu0 0.0
  %1154 = vmatpush.msra.mxu0 0.0
  %1155 = vmatpush.msra.mxu0 0.0
  %1156 = vmatpush.msra.mxu0 0.0
  %1157 = vmatpush.msra.mxu0 0.0
  %1158 = vmatpush.msra.mxu0 0.0
  %1159 = vmatpush.msra.mxu0 0.0
  %1160 = vmatpush.msra.mxu0 %v1151
  %1161 = vmatpush.msra.mxu0 %v1150
  %1162 = vmatpush.msra.mxu0 %v1149
  %1163 = vmatpush.msra.mxu0 %v1148
  %1164 = vmatpush.msra.mxu0 %v1147
  %1165 = vmatpush.msra.mxu0 %v1146
  %1166 = vmatpush.msra.mxu0 %v1145
  %1167 = vmatpush.msra.mxu0 %v1144
  %1168 = vmatmul.f32.gmra.mxu0 %v351
  %v1169 = vpop.f32.mrf.mxu0
  %v1170 = vadd.f32 0.0, %v1169
  %1171 = vmatmul.f32.gmra.mxu0 %v354
  %v1172 = vpop.f32.mrf.mxu0
  %v1173 = vadd.f32 0.0, %v1172
  %1174 = vmatmul.f32.gmra.mxu0 %v357
  %v1175 = vpop.f32.mrf.mxu0
  %v1176 = vadd.f32 0.0, %v1175
  %1177 = vmatmul.f32.gmra.mxu0 %v360
  %v1178 = vpop.f32.mrf.mxu0
  %v1179 = vadd.f32 0.0, %v1178
  %1180 = vmatmul.f32.gmra.mxu0 %v363
  %v1181 = vpop.f32.mrf.mxu0
  %v1182 = vadd.f32 0.0, %v1181
  %1183 = vmatmul.f32.gmra.mxu0 %v366
  %v1184 = vpop.f32.mrf.mxu0
  %v1185 = vadd.f32 0.0, %v1184
  %1186 = vmatmul.f32.gmra.mxu0 %v369
  %v1187 = vpop.f32.mrf.mxu0
  %v1188 = vadd.f32 0.0, %v1187
  %1189 = vmatmul.f32.gmra.mxu0 %v372
  %v1190 = vpop.f32.mrf.mxu0
  %v1191 = vadd.f32 0.0, %v1190
  %1192 = vmatmul.f32.gmra.mxu0 %v375
  %v1193 = vpop.f32.mrf.mxu0
  %v1194 = vadd.f32 0.0, %v1193
  %1195 = vmatmul.f32.gmra.mxu0 %v378
  %v1196 = vpop.f32.mrf.mxu0
  %v1197 = vadd.f32 0.0, %v1196
  %1198 = vmatmul.f32.gmra.mxu0 %v381
  %v1199 = vpop.f32.mrf.mxu0
  %v1200 = vadd.f32 0.0, %v1199
  %1201 = vmatmul.f32.gmra.mxu0 %v384
  %v1202 = vpop.f32.mrf.mxu0
  %v1203 = vadd.f32 0.0, %v1202
  %1204 = vmatmul.f32.gmra.mxu0 %v387
  %v1205 = vpop.f32.mrf.mxu0
  %v1206 = vadd.f32 0.0, %v1205
  %1207 = vmatmul.f32.gmra.mxu0 %v390
  %v1208 = vpop.f32.mrf.mxu0
  %v1209 = vadd.f32 0.0, %v1208
  %1210 = vmatmul.f32.gmra.mxu0 %v393
  %v1211 = vpop.f32.mrf.mxu0
  %v1212 = vadd.f32 0.0, %v1211
  %1213 = vmatmul.f32.gmra.mxu0 %v396
  %v1214 = vpop.f32.mrf.mxu0
  %v1215 = vadd.f32 0.0, %v1214
  %1216 = vdwg.mxu0
  %v1217 = vmul.f32 %v1170, %v957
  %v1218 = vmul.f32 %v1173, %v957
  %v1219 = vmul.f32 %v1176, %v957
  %v1220 = vmul.f32 %v1179, %v957
  %v1221 = vmul.f32 %v1182, %v957
  %v1222 = vmul.f32 %v1185, %v957
  %v1223 = vmul.f32 %v1188, %v957
  %v1224 = vmul.f32 %v1191, %v957
  %v1225 = vmul.f32 %v1194, %v957
  %v1226 = vmul.f32 %v1197, %v957
  %v1227 = vmul.f32 %v1200, %v957
  %v1228 = vmul.f32 %v1203, %v957
  %v1229 = vmul.f32 %v1206, %v957
  %v1230 = vmul.f32 %v1209, %v957
  %v1231 = vmul.f32 %v1212, %v957
  %v1232 = vmul.f32 %v1215, %v957
  %v1233 = vmul.f32 %v1170, %v959
  %v1234 = vmul.f32 %v1173, %v959
  %v1235 = vmul.f32 %v1176, %v959
  %v1236 = vmul.f32 %v1179, %v959
  %v1237 = vmul.f32 %v1182, %v959
  %v1238 = vmul.f32 %v1185, %v959
  %v1239 = vmul.f32 %v1188, %v959
  %v1240 = vmul.f32 %v1191, %v959
  %v1241 = vmul.f32 %v1194, %v959
  %v1242 = vmul.f32 %v1197, %v959
  %v1243 = vmul.f32 %v1200, %v959
  %v1244 = vmul.f32 %v1203, %v959
  %v1245 = vmul.f32 %v1206, %v959
  %v1246 = vmul.f32 %v1209, %v959
  %v1247 = vmul.f32 %v1212, %v959
  %v1248 = vmul.f32 %v1215, %v959
  %v1249 = vld [vmem:[%s5 + $0xc] sm:$0x1]
  %v1250 = vperm.slane %v1249, 0
  %v1251 = vld [vmem:[%s5 + $0xd] sm:$0x1]
  %v1252 = vperm.slane %v1251, 0
  %v1253 = vld [vmem:[%s5 + $0xe] sm:$0x1]
  %v1254 = vperm.slane %v1253, 0
  %v1255 = vld [vmem:[%s5 + $0xf] sm:$0x1]
  %v1256 = vperm.slane %v1255, 0
  %v1257 = vmul.f32 %v1170, %v1250
  %v1258 = vmul.f32 %v1173, %v1250
  %v1259 = vmul.f32 %v1176, %v1250
  %v1260 = vmul.f32 %v1179, %v1250
  %v1261 = vmul.f32 %v1182, %v1250
  %v1262 = vmul.f32 %v1185, %v1250
  %v1263 = vmul.f32 %v1188, %v1250
  %v1264 = vmul.f32 %v1191, %v1250
  %v1265 = vmul.f32 %v1194, %v1252
  %v1266 = vmul.f32 %v1197, %v1252
  %v1267 = vmul.f32 %v1200, %v1252
  %v1268 = vmul.f32 %v1203, %v1252
  %v1269 = vmul.f32 %v1206, %v1252
  %v1270 = vmul.f32 %v1209, %v1252
  %v1271 = vmul.f32 %v1212, %v1252
  %v1272 = vmul.f32 %v1215, %v1252
  %v1273 = vsub.f32 %v1257, %v1265
  %v1274 = vsub.f32 %v1258, %v1266
  %v1275 = vsub.f32 %v1259, %v1267
  %v1276 = vsub.f32 %v1260, %v1268
  %v1277 = vsub.f32 %v1261, %v1269
  %v1278 = vsub.f32 %v1262, %v1270
  %v1279 = vsub.f32 %v1263, %v1271
  %v1280 = vsub.f32 %v1264, %v1272
  %v1281 = vmax.f32 %v1273, 0.0
  %v1282 = vmax.f32 %v1274, 0.0
  %v1283 = vmax.f32 %v1275, 0.0
  %v1284 = vmax.f32 %v1276, 0.0
  %v1285 = vmax.f32 %v1277, 0.0
  %v1286 = vmax.f32 %v1278, 0.0
  %v1287 = vmax.f32 %v1279, 0.0
  %v1288 = vmax.f32 %v1280, 0.0
  %v1289 = vmul.f32 %v1170, %v1252
  %v1290 = vmul.f32 %v1173, %v1252
  %v1291 = vmul.f32 %v1176, %v1252
  %v1292 = vmul.f32 %v1179, %v1252
  %v1293 = vmul.f32 %v1182, %v1252
  %v1294 = vmul.f32 %v1185, %v1252
  %v1295 = vmul.f32 %v1188, %v1252
  %v1296 = vmul.f32 %v1191, %v1252
  %v1297 = vmul.f32 %v1194, %v1250
  %v1298 = vmul.f32 %v1197, %v1250
  %v1299 = vmul.f32 %v1200, %v1250
  %v1300 = vmul.f32 %v1203, %v1250
  %v1301 = vmul.f32 %v1206, %v1250
  %v1302 = vmul.f32 %v1209, %v1250
  %v1303 = vmul.f32 %v1212, %v1250
  %v1304 = vmul.f32 %v1215, %v1250
  %v1305 = vadd.f32 %v1289, %v1297
  %v1306 = vadd.f32 %v1290, %v1298
  %v1307 = vadd.f32 %v1291, %v1299
  %v1308 = vadd.f32 %v1292, %v1300
  %v1309 = vadd.f32 %v1293, %v1301
  %v1310 = vadd.f32 %v1294, %v1302
  %v1311 = vadd.f32 %v1295, %v1303
  %v1312 = vadd.f32 %v1296, %v1304
  %v1313 = vmax.f32 %v1305, 0.0
  %v1314 = vmax.f32 %v1306, 0.0
  %v1315 = vmax.f32 %v1307, 0.0
  %v1316 = vmax.f32 %v1308, 0.0
  %v1317 = vmax.f32 %v1309, 0.0
  %v1318 = vmax.f32 %v1310, 0.0
  %v1319 = vmax.f32 %v1311, 0.0
  %v1320 = vmax.f32 %v1312, 0.0
  %v1321 = vmul.f32 %v1281, %v1254
  %v1322 = vmul.f32 %v1282, %v1254
  %v1323 = vmul.f32 %v1283, %v1254
  %v1324 = vmul.f32 %v1284, %v1254
  %v1325 = vmul.f32 %v1285, %v1254
  %v1326 = vmul.f32 %v1286, %v1254
  %v1327 = vmul.f32 %v1287, %v1254
  %v1328 = vmul.f32 %v1288, %v1254
  %v1329 = vadd.f32 %v1321, 0.0
  %v1330 = vadd.f32 %v1322, 0.0
  %v1331 = vadd.f32 %v1323, 0.0
  %v1332 = vadd.f32 %v1324, 0.0
  %v1333 = vadd.f32 %v1325, 0.0
  %v1334 = vadd.f32 %v1326, 0.0
  %v1335 = vadd.f32 %v1327, 0.0
  %v1336 = vadd.f32 %v1328, 0.0
  %v1337 = vmul.f32 %v1313, %v1256
  %v1338 = vmul.f32 %v1314, %v1256
  %v1339 = vmul.f32 %v1315, %v1256
  %v1340 = vmul.f32 %v1316, %v1256
  %v1341 = vmul.f32 %v1317, %v1256
  %v1342 = vmul.f32 %v1318, %v1256
  %v1343 = vmul.f32 %v1319, %v1256
  %v1344 = vmul.f32 %v1320, %v1256
  %v1345 = vsub.f32 %v1329, %v1337
  %v1346 = vsub.f32 %v1330, %v1338
  %v1347 = vsub.f32 %v1331, %v1339
  %v1348 = vsub.f32 %v1332, %v1340
  %v1349 = vsub.f32 %v1333, %v1341
  %v1350 = vsub.f32 %v1334, %v1342
  %v1351 = vsub.f32 %v1335, %v1343
  %v1352 = vsub.f32 %v1336, %v1344
  %v1353 = vmul.f32 %v1281, %v1256
  %v1354 = vmul.f32 %v1282, %v1256
  %v1355 = vmul.f32 %v1283, %v1256
  %v1356 = vmul.f32 %v1284, %v1256
  %v1357 = vmul.f32 %v1285, %v1256
  %v1358 = vmul.f32 %v1286, %v1256
  %v1359 = vmul.f32 %v1287, %v1256
  %v1360 = vmul.f32 %v1288, %v1256
  %v1361 = vadd.f32 %v1353, 0.0
  %v1362 = vadd.f32 %v1354, 0.0
  %v1363 = vadd.f32 %v1355, 0.0
  %v1364 = vadd.f32 %v1356, 0.0
  %v1365 = vadd.f32 %v1357, 0.0
  %v1366 = vadd.f32 %v1358, 0.0
  %v1367 = vadd.f32 %v1359, 0.0
  %v1368 = vadd.f32 %v1360, 0.0
  %v1369 = vmul.f32 %v1313, %v1254
  %v1370 = vmul.f32 %v1314, %v1254
  %v1371 = vmul.f32 %v1315, %v1254
  %v1372 = vmul.f32 %v1316, %v1254
  %v1373 = vmul.f32 %v1317, %v1254
  %v1374 = vmul.f32 %v1318, %v1254
  %v1375 = vmul.f32 %v1319, %v1254
  %v1376 = vmul.f32 %v1320, %v1254
  %v1377 = vadd.f32 %v1361, %v1369
  %v1378 = vadd.f32 %v1362, %v1370
  %v1379 = vadd.f32 %v1363, %v1371
  %v1380 = vadd.f32 %v1364, %v1372
  %v1381 = vadd.f32 %v1365, %v1373
  %v1382 = vadd.f32 %v1366, %v1374
  %v1383 = vadd.f32 %v1367, %v1375
  %v1384 = vadd.f32 %v1368, %v1376
  %v1385 = vld [vmem:[%s5 + $0x10] sm:$0x1]
  %v1386 = vperm.slane %v1385, 0
  %v1387 = vld [vmem:[%s5 + $0x11] sm:$0x1]
  %v1388 = vperm.slane %v1387, 0
  %v1389 = vld [vmem:[%s5 + $0x12] sm:$0x1]
  %v1390 = vperm.slane %v1389, 0
  %v1391 = vld [vmem:[%s5 + $0x13] sm:$0x1]
  %v1392 = vperm.slane %v1391, 0
  %v1393 = vmul.f32 %v1217, %v1386
  %v1394 = vmul.f32 %v1218, %v1386
  %v1395 = vmul.f32 %v1219, %v1386
  %v1396 = vmul.f32 %v1220, %v1386
  %v1397 = vmul.f32 %v1221, %v1386
  %v1398 = vmul.f32 %v1222, %v1386
  %v1399 = vmul.f32 %v1223, %v1386
  %v1400 = vmul.f32 %v1224, %v1386
  %v1401 = vmul.f32 %v1225, %v1388
  %v1402 = vmul.f32 %v1226, %v1388
  %v1403 = vmul.f32 %v1227, %v1388
  %v1404 = vmul.f32 %v1228, %v1388
  %v1405 = vmul.f32 %v1229, %v1388
  %v1406 = vmul.f32 %v1230, %v1388
  %v1407 = vmul.f32 %v1231, %v1388
  %v1408 = vmul.f32 %v1232, %v1388
  %v1409 = vsub.f32 %v1393, %v1401
  %v1410 = vsub.f32 %v1394, %v1402
  %v1411 = vsub.f32 %v1395, %v1403
  %v1412 = vsub.f32 %v1396, %v1404
  %v1413 = vsub.f32 %v1397, %v1405
  %v1414 = vsub.f32 %v1398, %v1406
  %v1415 = vsub.f32 %v1399, %v1407
  %v1416 = vsub.f32 %v1400, %v1408
  %v1417 = vmax.f32 %v1409, 0.0
  %v1418 = vmax.f32 %v1410, 0.0
  %v1419 = vmax.f32 %v1411, 0.0
  %v1420 = vmax.f32 %v1412, 0.0
  %v1421 = vmax.f32 %v1413, 0.0
  %v1422 = vmax.f32 %v1414, 0.0
  %v1423 = vmax.f32 %v1415, 0.0
  %v1424 = vmax.f32 %v1416, 0.0
  %v1425 = vmul.f32 %v1217, %v1388
  %v1426 = vmul.f32 %v1218, %v1388
  %v1427 = vmul.f32 %v1219, %v1388
  %v1428 = vmul.f32 %v1220, %v1388
  %v1429 = vmul.f32 %v1221, %v1388
  %v1430 = vmul.f32 %v1222, %v1388
  %v1431 = vmul.f32 %v1223, %v1388
  %v1432 = vmul.f32 %v1224, %v1388
  %v1433 = vmul.f32 %v1225, %v1386
  %v1434 = vmul.f32 %v1226, %v1386
  %v1435 = vmul.f32 %v1227, %v1386
  %v1436 = vmul.f32 %v1228, %v1386
  %v1437 = vmul.f32 %v1229, %v1386
  %v1438 = vmul.f32 %v1230, %v1386
  %v1439 = vmul.f32 %v1231, %v1386
  %v1440 = vmul.f32 %v1232, %v1386
  %v1441 = vadd.f32 %v1425, %v1433
  %v1442 = vadd.f32 %v1426, %v1434
  %v1443 = vadd.f32 %v1427, %v1435
  %v1444 = vadd.f32 %v1428, %v1436
  %v1445 = vadd.f32 %v1429, %v1437
  %v1446 = vadd.f32 %v1430, %v1438
  %v1447 = vadd.f32 %v1431, %v1439
  %v1448 = vadd.f32 %v1432, %v1440
  %v1449 = vmax.f32 %v1441, 0.0
  %v1450 = vmax.f32 %v1442, 0.0
  %v1451 = vmax.f32 %v1443, 0.0
  %v1452 = vmax.f32 %v1444, 0.0
  %v1453 = vmax.f32 %v1445, 0.0
  %v1454 = vmax.f32 %v1446, 0.0
  %v1455 = vmax.f32 %v1447, 0.0
  %v1456 = vmax.f32 %v1448, 0.0
  %v1457 = vmul.f32 %v1417, %v1390
  %v1458 = vmul.f32 %v1418, %v1390
  %v1459 = vmul.f32 %v1419, %v1390
  %v1460 = vmul.f32 %v1420, %v1390
  %v1461 = vmul.f32 %v1421, %v1390
  %v1462 = vmul.f32 %v1422, %v1390
  %v1463 = vmul.f32 %v1423, %v1390
  %v1464 = vmul.f32 %v1424, %v1390
  %v1465 = vadd.f32 %v1345, %v1457
  %v1466 = vadd.f32 %v1346, %v1458
  %v1467 = vadd.f32 %v1347, %v1459
  %v1468 = vadd.f32 %v1348, %v1460
  %v1469 = vadd.f32 %v1349, %v1461
  %v1470 = vadd.f32 %v1350, %v1462
  %v1471 = vadd.f32 %v1351, %v1463
  %v1472 = vadd.f32 %v1352, %v1464
  %v1473 = vmul.f32 %v1449, %v1392
  %v1474 = vmul.f32 %v1450, %v1392
  %v1475 = vmul.f32 %v1451, %v1392
  %v1476 = vmul.f32 %v1452, %v1392
  %v1477 = vmul.f32 %v1453, %v1392
  %v1478 = vmul.f32 %v1454, %v1392
  %v1479 = vmul.f32 %v1455, %v1392
  %v1480 = vmul.f32 %v1456, %v1392
  %v1481 = vsub.f32 %v1465, %v1473
  %v1482 = vsub.f32 %v1466, %v1474
  %v1483 = vsub.f32 %v1467, %v1475
  %v1484 = vsub.f32 %v1468, %v1476
  %v1485 = vsub.f32 %v1469, %v1477
  %v1486 = vsub.f32 %v1470, %v1478
  %v1487 = vsub.f32 %v1471, %v1479
  %v1488 = vsub.f32 %v1472, %v1480
  %v1489 = vmul.f32 %v1417, %v1392
  %v1490 = vmul.f32 %v1418, %v1392
  %v1491 = vmul.f32 %v1419, %v1392
  %v1492 = vmul.f32 %v1420, %v1392
  %v1493 = vmul.f32 %v1421, %v1392
  %v1494 = vmul.f32 %v1422, %v1392
  %v1495 = vmul.f32 %v1423, %v1392
  %v1496 = vmul.f32 %v1424, %v1392
  %v1497 = vadd.f32 %v1377, %v1489
  %v1498 = vadd.f32 %v1378, %v1490
  %v1499 = vadd.f32 %v1379, %v1491
  %v1500 = vadd.f32 %v1380, %v1492
  %v1501 = vadd.f32 %v1381, %v1493
  %v1502 = vadd.f32 %v1382, %v1494
  %v1503 = vadd.f32 %v1383, %v1495
  %v1504 = vadd.f32 %v1384, %v1496
  %v1505 = vmul.f32 %v1449, %v1390
  %v1506 = vmul.f32 %v1450, %v1390
  %v1507 = vmul.f32 %v1451, %v1390
  %v1508 = vmul.f32 %v1452, %v1390
  %v1509 = vmul.f32 %v1453, %v1390
  %v1510 = vmul.f32 %v1454, %v1390
  %v1511 = vmul.f32 %v1455, %v1390
  %v1512 = vmul.f32 %v1456, %v1390
  %v1513 = vadd.f32 %v1497, %v1505
  %v1514 = vadd.f32 %v1498, %v1506
  %v1515 = vadd.f32 %v1499, %v1507
  %v1516 = vadd.f32 %v1500, %v1508
  %v1517 = vadd.f32 %v1501, %v1509
  %v1518 = vadd.f32 %v1502, %v1510
  %v1519 = vadd.f32 %v1503, %v1511
  %v1520 = vadd.f32 %v1504, %v1512
  %v1521 = vld [vmem:[%s5 + $0x14] sm:$0x1]
  %v1522 = vperm.slane %v1521, 0
  %v1523 = vld [vmem:[%s5 + $0x15] sm:$0x1]
  %v1524 = vperm.slane %v1523, 0
  %v1525 = vld [vmem:[%s5 + $0x16] sm:$0x1]
  %v1526 = vperm.slane %v1525, 0
  %v1527 = vld [vmem:[%s5 + $0x17] sm:$0x1]
  %v1528 = vperm.slane %v1527, 0
  %v1529 = vmul.f32 %v1233, %v1522
  %v1530 = vmul.f32 %v1234, %v1522
  %v1531 = vmul.f32 %v1235, %v1522
  %v1532 = vmul.f32 %v1236, %v1522
  %v1533 = vmul.f32 %v1237, %v1522
  %v1534 = vmul.f32 %v1238, %v1522
  %v1535 = vmul.f32 %v1239, %v1522
  %v1536 = vmul.f32 %v1240, %v1522
  %v1537 = vmul.f32 %v1241, %v1524
  %v1538 = vmul.f32 %v1242, %v1524
  %v1539 = vmul.f32 %v1243, %v1524
  %v1540 = vmul.f32 %v1244, %v1524
  %v1541 = vmul.f32 %v1245, %v1524
  %v1542 = vmul.f32 %v1246, %v1524
  %v1543 = vmul.f32 %v1247, %v1524
  %v1544 = vmul.f32 %v1248, %v1524
  %v1545 = vsub.f32 %v1529, %v1537
  %v1546 = vsub.f32 %v1530, %v1538
  %v1547 = vsub.f32 %v1531, %v1539
  %v1548 = vsub.f32 %v1532, %v1540
  %v1549 = vsub.f32 %v1533, %v1541
  %v1550 = vsub.f32 %v1534, %v1542
  %v1551 = vsub.f32 %v1535, %v1543
  %v1552 = vsub.f32 %v1536, %v1544
  %v1553 = vmax.f32 %v1545, 0.0
  %v1554 = vmax.f32 %v1546, 0.0
  %v1555 = vmax.f32 %v1547, 0.0
  %v1556 = vmax.f32 %v1548, 0.0
  %v1557 = vmax.f32 %v1549, 0.0
  %v1558 = vmax.f32 %v1550, 0.0
  %v1559 = vmax.f32 %v1551, 0.0
  %v1560 = vmax.f32 %v1552, 0.0
  %v1561 = vmul.f32 %v1233, %v1524
  %v1562 = vmul.f32 %v1234, %v1524
  %v1563 = vmul.f32 %v1235, %v1524
  %v1564 = vmul.f32 %v1236, %v1524
  %v1565 = vmul.f32 %v1237, %v1524
  %v1566 = vmul.f32 %v1238, %v1524
  %v1567 = vmul.f32 %v1239, %v1524
  %v1568 = vmul.f32 %v1240, %v1524
  %v1569 = vmul.f32 %v1241, %v1522
  %v1570 = vmul.f32 %v1242, %v1522
  %v1571 = vmul.f32 %v1243, %v1522
  %v1572 = vmul.f32 %v1244, %v1522
  %v1573 = vmul.f32 %v1245, %v1522
  %v1574 = vmul.f32 %v1246, %v1522
  %v1575 = vmul.f32 %v1247, %v1522
  %v1576 = vmul.f32 %v1248, %v1522
  %v1577 = vadd.f32 %v1561, %v1569
  %v1578 = vadd.f32 %v1562, %v1570
  %v1579 = vadd.f32 %v1563, %v1571
  %v1580 = vadd.f32 %v1564, %v1572
  %v1581 = vadd.f32 %v1565, %v1573
  %v1582 = vadd.f32 %v1566, %v1574
  %v1583 = vadd.f32 %v1567, %v1575
  %v1584 = vadd.f32 %v1568, %v1576
  %v1585 = vmax.f32 %v1577, 0.0
  %v1586 = vmax.f32 %v1578, 0.0
  %v1587 = vmax.f32 %v1579, 0.0
  %v1588 = vmax.f32 %v1580, 0.0
  %v1589 = vmax.f32 %v1581, 0.0
  %v1590 = vmax.f32 %v1582, 0.0
  %v1591 = vmax.f32 %v1583, 0.0
  %v1592 = vmax.f32 %v1584, 0.0
  %v1593 = vmul.f32 %v1553, %v1526
  %v1594 = vmul.f32 %v1554, %v1526
  %v1595 = vmul.f32 %v1555, %v1526
  %v1596 = vmul.f32 %v1556, %v1526
  %v1597 = vmul.f32 %v1557, %v1526
  %v1598 = vmul.f32 %v1558, %v1526
  %v1599 = vmul.f32 %v1559, %v1526
  %v1600 = vmul.f32 %v1560, %v1526
  %v1601 = vadd.f32 %v1481, %v1593
  %v1602 = vadd.f32 %v1482, %v1594
  %v1603 = vadd.f32 %v1483, %v1595
  %v1604 = vadd.f32 %v1484, %v1596
  %v1605 = vadd.f32 %v1485, %v1597
  %v1606 = vadd.f32 %v1486, %v1598
  %v1607 = vadd.f32 %v1487, %v1599
  %v1608 = vadd.f32 %v1488, %v1600
  %v1609 = vmul.f32 %v1585, %v1528
  %v1610 = vmul.f32 %v1586, %v1528
  %v1611 = vmul.f32 %v1587, %v1528
  %v1612 = vmul.f32 %v1588, %v1528
  %v1613 = vmul.f32 %v1589, %v1528
  %v1614 = vmul.f32 %v1590, %v1528
  %v1615 = vmul.f32 %v1591, %v1528
  %v1616 = vmul.f32 %v1592, %v1528
  %v1617 = vsub.f32 %v1601, %v1609
  %v1618 = vsub.f32 %v1602, %v1610
  %v1619 = vsub.f32 %v1603, %v1611
  %v1620 = vsub.f32 %v1604, %v1612
  %v1621 = vsub.f32 %v1605, %v1613
  %v1622 = vsub.f32 %v1606, %v1614
  %v1623 = vsub.f32 %v1607, %v1615
  %v1624 = vsub.f32 %v1608, %v1616
  %v1625 = vmul.f32 %v1553, %v1528
  %v1626 = vmul.f32 %v1554, %v1528
  %v1627 = vmul.f32 %v1555, %v1528
  %v1628 = vmul.f32 %v1556, %v1528
  %v1629 = vmul.f32 %v1557, %v1528
  %v1630 = vmul.f32 %v1558, %v1528
  %v1631 = vmul.f32 %v1559, %v1528
  %v1632 = vmul.f32 %v1560, %v1528
  %v1633 = vadd.f32 %v1513, %v1625
  %v1634 = vadd.f32 %v1514, %v1626
  %v1635 = vadd.f32 %v1515, %v1627
  %v1636 = vadd.f32 %v1516, %v1628
  %v1637 = vadd.f32 %v1517, %v1629
  %v1638 = vadd.f32 %v1518, %v1630
  %v1639 = vadd.f32 %v1519, %v1631
  %v1640 = vadd.f32 %v1520, %v1632
  %v1641 = vmul.f32 %v1585, %v1526
  %v1642 = vmul.f32 %v1586, %v1526
  %v1643 = vmul.f32 %v1587, %v1526
  %v1644 = vmul.f32 %v1588, %v1526
  %v1645 = vmul.f32 %v1589, %v1526
  %v1646 = vmul.f32 %v1590, %v1526
  %v1647 = vmul.f32 %v1591, %v1526
  %v1648 = vmul.f32 %v1592, %v1526
  %v1649 = vadd.f32 %v1633, %v1641
  %v1650 = vadd.f32 %v1634, %v1642
  %v1651 = vadd.f32 %v1635, %v1643
  %v1652 = vadd.f32 %v1636, %v1644
  %v1653 = vadd.f32 %v1637, %v1645
  %v1654 = vadd.f32 %v1638, %v1646
  %v1655 = vadd.f32 %v1639, %v1647
  %v1656 = vadd.f32 %v1640, %v1648
  %1657 = vmatpush.msra.mxu0 %v1656
  %1658 = vmatpush.msra.mxu0 %v1655
  %1659 = vmatpush.msra.mxu0 %v1654
  %1660 = vmatpush.msra.mxu0 %v1653
  %1661 = vmatpush.msra.mxu0 %v1652
  %1662 = vmatpush.msra.mxu0 %v1651
  %1663 = vmatpush.msra.mxu0 %v1650
  %1664 = vmatpush.msra.mxu0 %v1649
  %1665 = vmatpush.msra.mxu0 %v1624
  %1666 = vmatpush.msra.mxu0 %v1623
  %1667 = vmatpush.msra.mxu0 %v1622
  %1668 = vmatpush.msra.mxu0 %v1621
  %1669 = vmatpush.msra.mxu0 %v1620
  %1670 = vmatpush.msra.mxu0 %v1619
  %1671 = vmatpush.msra.mxu0 %v1618
  %1672 = vmatpush.msra.mxu0 %v1617
  %1673 = vmatmul.f32.gmra.mxu0 %v133
  %v1674 = vpop.f32.mrf.mxu0
  %v1675 = vadd.f32 0.0, %v1674
  %1676 = vmatmul.f32.gmra.mxu0 %v134
  %v1677 = vpop.f32.mrf.mxu0
  %v1678 = vadd.f32 0.0, %v1677
  %1679 = vmatmul.f32.gmra.mxu0 %v135
  %v1680 = vpop.f32.mrf.mxu0
  %v1681 = vadd.f32 0.0, %v1680
  %1682 = vmatmul.f32.gmra.mxu0 %v136
  %v1683 = vpop.f32.mrf.mxu0
  %v1684 = vadd.f32 0.0, %v1683
  %1685 = vmatmul.f32.gmra.mxu0 %v137
  %v1686 = vpop.f32.mrf.mxu0
  %v1687 = vadd.f32 0.0, %v1686
  %1688 = vmatmul.f32.gmra.mxu0 %v138
  %v1689 = vpop.f32.mrf.mxu0
  %v1690 = vadd.f32 0.0, %v1689
  %1691 = vmatmul.f32.gmra.mxu0 %v139
  %v1692 = vpop.f32.mrf.mxu0
  %v1693 = vadd.f32 0.0, %v1692
  %1694 = vmatmul.f32.gmra.mxu0 %v140
  %v1695 = vpop.f32.mrf.mxu0
  %1696 = vdwg.mxu0
  %v1697 = vadd.f32 %v944, %v1675
  %v1698 = vadd.f32 %v945, %v1678
  %v1699 = vadd.f32 %v946, %v1681
  %v1700 = vadd.f32 %v947, %v1684
  %v1701 = vadd.f32 %v948, %v1687
  %v1702 = vadd.f32 %v949, %v1690
  %v1703 = vadd.f32 %v950, %v1693
  %v1704 = vld [vmem:[%s10] sm:$0x1]
  %v1706 = vperm.slane %v1704, 0
  %v1708 = vld [vmem:[%s9] sm:$0xff]
  %v1709 = vld [vmem:[%s9 + $0x8] sm:$0xff]
  %v1710 = vld [vmem:[%s9 + $0x10] sm:$0xff]
  %v1711 = vld [vmem:[%s9 + $0x18] sm:$0xff]
  %v1713 = vsel %vm149, %v1697, 0
  %1715 = vmatpush.msra.mxu0 0.0
  %1716 = vmatpush.msra.mxu0 0.0
  %1717 = vmatpush.msra.mxu0 0.0
  %1718 = vmatpush.msra.mxu0 0.0
  %1719 = vmatpush.msra.mxu0 0.0
  %1720 = vmatpush.msra.mxu0 0.0
  %1721 = vmatpush.msra.mxu0 0.0
  %1722 = vmatpush.msra.mxu0 0.0
  %1723 = vmatpush.msra.mxu0 0.0
  %1724 = vmatpush.msra.mxu0 0.0
  %1725 = vmatpush.msra.mxu0 0.0
  %1726 = vmatpush.msra.mxu0 0.0
  %1727 = vmatpush.msra.mxu0 %v1711
  %1728 = vmatpush.msra.mxu0 %v1710
  %1729 = vmatpush.msra.mxu0 %v1709
  %1730 = vmatpush.msra.mxu0 %v1708
  %1731 = vmatmul.f32.gmra.mxu0 %v1713
  %v1732 = vpop.f32.mrf.mxu0
  %v1733 = vadd.f32 0.0, %v1732
  %1734 = vdwg.mxu0
  %v1735 = vadd.f32 %v1706, %v1733
  %v1736 = vld [vmem:[%s9 + $0x20] sm:$0xff]
  %v1737 = vld [vmem:[%s9 + $0x28] sm:$0xff]
  %v1738 = vld [vmem:[%s9 + $0x30] sm:$0xff]
  %v1739 = vld [vmem:[%s9 + $0x38] sm:$0xff]
  %v1741 = vsel %vm149, %v1698, 0
  %1743 = vmatpush.msra.mxu0 0.0
  %1744 = vmatpush.msra.mxu0 0.0
  %1745 = vmatpush.msra.mxu0 0.0
  %1746 = vmatpush.msra.mxu0 0.0
  %1747 = vmatpush.msra.mxu0 0.0
  %1748 = vmatpush.msra.mxu0 0.0
  %1749 = vmatpush.msra.mxu0 0.0
  %1750 = vmatpush.msra.mxu0 0.0
  %1751 = vmatpush.msra.mxu0 0.0
  %1752 = vmatpush.msra.mxu0 0.0
  %1753 = vmatpush.msra.mxu0 0.0
  %1754 = vmatpush.msra.mxu0 0.0
  %1755 = vmatpush.msra.mxu0 %v1739
  %1756 = vmatpush.msra.mxu0 %v1738
  %1757 = vmatpush.msra.mxu0 %v1737
  %1758 = vmatpush.msra.mxu0 %v1736
  %1759 = vmatmul.f32.gmra.mxu0 %v1741
  %v1760 = vpop.f32.mrf.mxu0
  %v1761 = vadd.f32 0.0, %v1760
  %1762 = vdwg.mxu0
  %v1763 = vadd.f32 %v1735, %v1761
  %v1764 = vld [vmem:[%s9 + $0x40] sm:$0xff]
  %v1765 = vld [vmem:[%s9 + $0x48] sm:$0xff]
  %v1766 = vld [vmem:[%s9 + $0x50] sm:$0xff]
  %v1767 = vld [vmem:[%s9 + $0x58] sm:$0xff]
  %v1769 = vsel %vm149, %v1699, 0
  %1771 = vmatpush.msra.mxu0 0.0
  %1772 = vmatpush.msra.mxu0 0.0
  %1773 = vmatpush.msra.mxu0 0.0
  %1774 = vmatpush.msra.mxu0 0.0
  %1775 = vmatpush.msra.mxu0 0.0
  %1776 = vmatpush.msra.mxu0 0.0
  %1777 = vmatpush.msra.mxu0 0.0
  %1778 = vmatpush.msra.mxu0 0.0
  %1779 = vmatpush.msra.mxu0 0.0
  %1780 = vmatpush.msra.mxu0 0.0
  %1781 = vmatpush.msra.mxu0 0.0
  %1782 = vmatpush.msra.mxu0 0.0
  %1783 = vmatpush.msra.mxu0 %v1767
  %1784 = vmatpush.msra.mxu0 %v1766
  %1785 = vmatpush.msra.mxu0 %v1765
  %1786 = vmatpush.msra.mxu0 %v1764
  %1787 = vmatmul.f32.gmra.mxu0 %v1769
  %v1788 = vpop.f32.mrf.mxu0
  %v1789 = vadd.f32 0.0, %v1788
  %1790 = vdwg.mxu0
  %v1791 = vadd.f32 %v1763, %v1789
  %v1792 = vld [vmem:[%s9 + $0x60] sm:$0xff]
  %v1793 = vld [vmem:[%s9 + $0x68] sm:$0xff]
  %v1794 = vld [vmem:[%s9 + $0x70] sm:$0xff]
  %v1795 = vld [vmem:[%s9 + $0x78] sm:$0xff]
  %v1797 = vsel %vm149, %v1700, 0
  %1799 = vmatpush.msra.mxu0 0.0
  %1800 = vmatpush.msra.mxu0 0.0
  %1801 = vmatpush.msra.mxu0 0.0
  %1802 = vmatpush.msra.mxu0 0.0
  %1803 = vmatpush.msra.mxu0 0.0
  %1804 = vmatpush.msra.mxu0 0.0
  %1805 = vmatpush.msra.mxu0 0.0
  %1806 = vmatpush.msra.mxu0 0.0
  %1807 = vmatpush.msra.mxu0 0.0
  %1808 = vmatpush.msra.mxu0 0.0
  %1809 = vmatpush.msra.mxu0 0.0
  %1810 = vmatpush.msra.mxu0 0.0
  %1811 = vmatpush.msra.mxu0 %v1795
  %1812 = vmatpush.msra.mxu0 %v1794
  %1813 = vmatpush.msra.mxu0 %v1793
  %1814 = vmatpush.msra.mxu0 %v1792
  %1815 = vmatmul.f32.gmra.mxu0 %v1797
  %v1816 = vpop.f32.mrf.mxu0
  %v1817 = vadd.f32 0.0, %v1816
  %1818 = vdwg.mxu0
  %v1819 = vadd.f32 %v1791, %v1817
  %v1820 = vld [vmem:[%s9 + $0x80] sm:$0xff]
  %v1821 = vld [vmem:[%s9 + $0x88] sm:$0xff]
  %v1822 = vld [vmem:[%s9 + $0x90] sm:$0xff]
  %v1823 = vld [vmem:[%s9 + $0x98] sm:$0xff]
  %v1825 = vsel %vm149, %v1701, 0
  %1827 = vmatpush.msra.mxu0 0.0
  %1828 = vmatpush.msra.mxu0 0.0
  %1829 = vmatpush.msra.mxu0 0.0
  %1830 = vmatpush.msra.mxu0 0.0
  %1831 = vmatpush.msra.mxu0 0.0
  %1832 = vmatpush.msra.mxu0 0.0
  %1833 = vmatpush.msra.mxu0 0.0
  %1834 = vmatpush.msra.mxu0 0.0
  %1835 = vmatpush.msra.mxu0 0.0
  %1836 = vmatpush.msra.mxu0 0.0
  %1837 = vmatpush.msra.mxu0 0.0
  %1838 = vmatpush.msra.mxu0 0.0
  %1839 = vmatpush.msra.mxu0 %v1823
  %1840 = vmatpush.msra.mxu0 %v1822
  %1841 = vmatpush.msra.mxu0 %v1821
  %1842 = vmatpush.msra.mxu0 %v1820
  %1843 = vmatmul.f32.gmra.mxu0 %v1825
  %v1844 = vpop.f32.mrf.mxu0
  %v1845 = vadd.f32 0.0, %v1844
  %1846 = vdwg.mxu0
  %v1847 = vadd.f32 %v1819, %v1845
  %v1848 = vld [vmem:[%s9 + $0xa0] sm:$0xff]
  %v1849 = vld [vmem:[%s9 + $0xa8] sm:$0xff]
  %v1850 = vld [vmem:[%s9 + $0xb0] sm:$0xff]
  %v1851 = vld [vmem:[%s9 + $0xb8] sm:$0xff]
  %v1853 = vsel %vm149, %v1702, 0
  %1855 = vmatpush.msra.mxu0 0.0
  %1856 = vmatpush.msra.mxu0 0.0
  %1857 = vmatpush.msra.mxu0 0.0
  %1858 = vmatpush.msra.mxu0 0.0
  %1859 = vmatpush.msra.mxu0 0.0
  %1860 = vmatpush.msra.mxu0 0.0
  %1861 = vmatpush.msra.mxu0 0.0
  %1862 = vmatpush.msra.mxu0 0.0
  %1863 = vmatpush.msra.mxu0 0.0
  %1864 = vmatpush.msra.mxu0 0.0
  %1865 = vmatpush.msra.mxu0 0.0
  %1866 = vmatpush.msra.mxu0 0.0
  %1867 = vmatpush.msra.mxu0 %v1851
  %1868 = vmatpush.msra.mxu0 %v1850
  %1869 = vmatpush.msra.mxu0 %v1849
  %1870 = vmatpush.msra.mxu0 %v1848
  %1871 = vmatmul.f32.gmra.mxu0 %v1853
  %v1872 = vpop.f32.mrf.mxu0
  %v1873 = vadd.f32 0.0, %v1872
  %1874 = vdwg.mxu0
  %v1875 = vadd.f32 %v1847, %v1873
  %v1876 = vld [vmem:[%s9 + $0xc0] sm:$0xff]
  %v1877 = vld [vmem:[%s9 + $0xc8] sm:$0xff]
  %v1878 = vld [vmem:[%s9 + $0xd0] sm:$0xff]
  %v1879 = vld [vmem:[%s9 + $0xd8] sm:$0xff]
  %v1881 = vsel %vm149, %v1703, 0
  %1883 = vmatpush.msra.mxu0 0.0
  %1884 = vmatpush.msra.mxu0 0.0
  %1885 = vmatpush.msra.mxu0 0.0
  %1886 = vmatpush.msra.mxu0 0.0
  %1887 = vmatpush.msra.mxu0 0.0
  %1888 = vmatpush.msra.mxu0 0.0
  %1889 = vmatpush.msra.mxu0 0.0
  %1890 = vmatpush.msra.mxu0 0.0
  %1891 = vmatpush.msra.mxu0 0.0
  %1892 = vmatpush.msra.mxu0 0.0
  %1893 = vmatpush.msra.mxu0 0.0
  %1894 = vmatpush.msra.mxu0 0.0
  %1895 = vmatpush.msra.mxu0 %v1879
  %1896 = vmatpush.msra.mxu0 %v1878
  %1897 = vmatpush.msra.mxu0 %v1877
  %1898 = vmatpush.msra.mxu0 %v1876
  %1899 = vmatmul.f32.gmra.mxu0 %v1881
  %v1900 = vpop.f32.mrf.mxu0
  %v1901 = vadd.f32 0.0, %v1900
  %1902 = vdwg.mxu0
  %v1903 = vadd.f32 %v1875, %v1901
  %1904 = vst [vmem:[%s11] sm:$0xff] %v1903
  // Predicated region
  $region46: #{affirm_forward.1} parent=0 // pred_check
    _
  $region47: #{affirm_forward.1} parent=0 // pred_check_branch
    %1906 = sbr.rel (0) target = $region49
  $region48: #{affirm_forward.1} parent=0 // pred_region
    _
  $region49: #{affirm_forward.1} parent=0 // pred_fallthru
    _
  // Predicated region
  $region50: #{affirm_forward.1} parent=0 // pred_check
    _
  $region51: #{affirm_forward.1} parent=0 // pred_check_branch
    %1908 = sbr.rel (0) target = $region53
  $region52: #{affirm_forward.1} parent=0 // pred_region
    _
  $region53: #{affirm_forward.1} parent=0 // pred_fallthru
    _

</llo_original>
